<compile_context>
chip_gen: v7x
topology: tpu7x:2x2x1
jax: 0.10.0
libtpu: 0.0.40
codegen_flags: <defaults>
</compile_context>

<pallas_src>
import functools

import jax
import jax.numpy as jnp
from jax import lax
from jax.experimental import pallas as pl
from jax.experimental.pallas import tpu as pltpu


def rnn_kernel(gin_ref, wrec_ref, wk_ref, blin_ref, out_ref, *, unroll):
    """One batch tile of the fused bidirectional LSTM recurrence + Linear head.

    gin_ref : (T, Bb, 8H)   precomputed input->gate projections (+ both biases),
                            fused layout [i_f i_b | f_f f_b | g_f g_b | o_f o_b];
                            row t pairs x[t] (fwd) with x[T-1-t] (bwd).
    wrec_ref: (2H, 8H)      block-diagonal recurrent weights on the carry [h_f|h_b] (f32).
    wk_ref  : (T, 2H, Opad) Linear weight, rows permuted to the per-step hidden layout,
                            output lanes zero-padded to a 128 multiple.
    blin_ref: (1, Opad)     Linear bias (zero-padded).
    out_ref : (Bb, Opad)
    """
    T, Bb, _ = gin_ref.shape
    H2 = wrec_ref.shape[0]            # 2H (both directions fused)
    Opad = out_ref.shape[1]

    wrec = wrec_ref[...]              # loop-invariant, stays resident across timesteps
    # NOTE: a further latency win is to keep wrec resident in the MXU weight registers
    # across steps via pltpu.matmul_push_rhs / matmul_acc_lhs / matmul_pop; jnp.dot is
    # kept here for portability across v5e/v6e/v7x MXU geometries.

    def step(t, carry):
        h, c, acc = carry
        # one fused recurrent matmul per step (both directions); input part precomputed
        gates = gin_ref[t].astype(jnp.float32) + jnp.dot(
            h, wrec, preferred_element_type=jnp.float32)
        i = jax.nn.sigmoid(gates[:, 0 * H2:1 * H2])
        f = jax.nn.sigmoid(gates[:, 1 * H2:2 * H2])
        g = jnp.tanh(gates[:, 2 * H2:3 * H2])
        o = jax.nn.sigmoid(gates[:, 3 * H2:4 * H2])
        c = f * c + i * g
        h = o * jnp.tanh(c)
        # per-step Linear-head accumulation: off the recurrent critical path (hides
        # under MXU slack), avoids a non-128-aligned concat and T live hidden states.
        wk_t = wk_ref[t]                                  # (2H, Opad)
        acc = acc + jnp.dot(h.astype(wk_t.dtype), wk_t,
                            preferred_element_type=jnp.float32)
        return h, c, acc

    h0 = jnp.zeros((Bb, H2), jnp.float32)                 # [h_fwd | h_bwd]
    c0 = jnp.zeros((Bb, H2), jnp.float32)                 # [c_fwd | c_bwd]
    a0 = jnp.zeros((Bb, Opad), jnp.float32)
    _, _, acc = lax.fori_loop(0, T, step, (h0, c0, a0), unroll=unroll)

    out_ref[...] = (acc + blin_ref[...]).astype(out_ref.dtype)


def _fuse_gate_blocks(a_f, a_b, H):
    """PyTorch per-direction gate order (i,f,g,o) -> fused last-axis layout
    [i_f i_b f_f f_b g_f g_b o_f o_b]."""
    shp = a_f.shape[:-1]
    af = a_f.reshape(*shp, 4, 1, H)
    ab = a_b.reshape(*shp, 4, 1, H)
    return jnp.concatenate([af, ab], axis=-2).reshape(*shp, 8 * H)


def init_params(key, input_size, hidden_size, output_size, seq_len):
    """Deterministic params with the same shapes as nn.LSTM(bidirectional) + nn.Linear."""
    H = hidden_size
    s = 1.0 / float(H) ** 0.5
    ks = jax.random.split(key, 10)
    u = lambda k, shape: jax.random.uniform(k, shape, jnp.float32, -s, s)
    return dict(
        w_ih_f=u(ks[0], (4 * H, input_size)),            # weight_ih_l0
        w_hh_f=u(ks[1], (4 * H, H)),                     # weight_hh_l0
        b_ih_f=u(ks[2], (4 * H,)),
        b_hh_f=u(ks[3], (4 * H,)),
        w_ih_b=u(ks[4], (4 * H, input_size)),            # weight_ih_l0_reverse
        w_hh_b=u(ks[5], (4 * H, H)),                     # weight_hh_l0_reverse
        b_ih_b=u(ks[6], (4 * H,)),
        b_hh_b=u(ks[7], (4 * H,)),
        w_lin=u(ks[8], (output_size, 2 * H * seq_len)),  # Linear.weight
        b_lin=u(ks[9], (output_size,)),                  # Linear.bias
    )


def pack_params(params, seq_len, matmul_dtype=jnp.bfloat16):
    """One-time weight repacking (hoisted out of the per-call path).

    matmul_dtype applies only to the NON-recurrent matmul operands (hoisted input
    projection, Linear head, and the stored gin array); the recurrent weights and all
    gate/state math stay f32 so error does not compound through the recurrence.
    """
    H = params["w_hh_f"].shape[1]
    O = params["w_lin"].shape[0]
    T = seq_len
    H2, H8 = 2 * H, 8 * H
    O_pad = ((O + 127) // 128) * 128                     # lane-dense output stores

    # hoisted input->gate projection weights (pre-transposed) and fused biases
    w_in_f = params["w_ih_f"].T.astype(matmul_dtype)     # (D, 4H)
    w_in_b = params["w_ih_b"].T.astype(matmul_dtype)
    b_f = (params["b_ih_f"] + params["b_hh_f"]).astype(jnp.float32)
    b_b = (params["b_ih_b"] + params["b_hh_b"]).astype(jnp.float32)

    # block-diagonal recurrent weight for the fused carry [h_f | h_b]  (kept f32)
    whhf_t = params["w_hh_f"].T.reshape(H, 4, 1, H)
    whhb_t = params["w_hh_b"].T.reshape(H, 4, 1, H)
    z = jnp.zeros((H, 4, 1, H), jnp.float32)
    wrec = jnp.concatenate([
        jnp.concatenate([whhf_t, z], axis=2).reshape(H, H8),   # rows driven by h_f
        jnp.concatenate([z, whhb_t], axis=2).reshape(H, H8),   # rows driven by h_b
    ], axis=0).astype(jnp.float32)                             # (2H, 8H)

    # Linear head: rows permuted to the per-step [h_f(t) | h_b(T-1-t)] kernel layout
    wlin_t = params["w_lin"].T.reshape(T, 2, H, O)             # (time, dir, H, O)
    wk = jnp.concatenate([wlin_t[:, 0], wlin_t[::-1, 1]], axis=1)   # (T, 2H, O)
    wk = jnp.pad(wk, ((0, 0), (0, 0), (0, O_pad - O))).astype(matmul_dtype)
    blin = jnp.pad(params["b_lin"], (0, O_pad - O)).reshape(1, O_pad).astype(jnp.float32)

    return dict(w_in_f=w_in_f, w_in_b=w_in_b, b_f=b_f, b_b=b_b,
                wrec=wrec, wk=wk, blin=blin,
                hidden_size=H, seq_len=T, output_size=O,
                matmul_dtype=matmul_dtype, gin_dtype=matmul_dtype)


def rnn_pallas(x, packed, *, batch_block=None, single_buffer_weights=False, unroll=None):
    """x: (B, T, D) batch-first, like the PyTorch module. Returns (B, O) float32."""
    B, T, D = x.shape
    H = packed["hidden_size"]
    O = packed["output_size"]
    assert T == packed["seq_len"], "pack_params seq_len must match x.shape[1]"
    H2, H8 = 2 * H, 8 * H
    O_pad = packed["blin"].shape[1]
    mdt = packed["matmul_dtype"]
    gin_dtype = packed["gin_dtype"]

    # --- Hoisted input->gate projections (biases folded), f32 accumulation ---
    x_tm = jnp.transpose(x, (1, 0, 2)).astype(mdt)             # (T, B, D) time-major
    gf = jnp.einsum('tbd,dg->tbg', x_tm, packed["w_in_f"],
                    preferred_element_type=jnp.float32) + packed["b_f"]      # time t
    gb = jnp.einsum('tbd,dg->tbg', x_tm[::-1], packed["w_in_b"],
                    preferred_element_type=jnp.float32) + packed["b_b"]      # time T-1-t
    gin = _fuse_gate_blocks(gf, gb, H).astype(gin_dtype)        # (T, B, 8H)

    # --- Sublane-aligned batch tiles; >=2 grid steps once B exceeds one tile ---
    sub = 16 if jnp.dtype(gin_dtype).itemsize == 2 else 8
    if batch_block is None:
        if B <= sub:
            tb = sub
        else:
            tb = min(128, (B + 1) // 2)
            tb = max(sub, (tb // sub) * sub)
    else:
        tb = max(sub, (int(batch_block) // sub) * sub)
    B_pad = ((B + tb - 1) // tb) * tb
    if B_pad > B:
        gin = jnp.pad(gin, ((0, 0), (0, B_pad - B), (0, 0)))    # zero rows, sliced off below
    grid = (B_pad // tb,)

    if unroll is None:
        unroll = T if T <= 16 else 8

    # Grid-invariant weights never change between batch tiles; optionally single-buffer
    # them to halve their VMEM footprint (valuable on v7x's 64 MiB at production T*H).
    w_mode = dict(pipeline_mode=pl.Buffered(buffer_count=1)) if single_buffer_weights else {}

    out = pl.pallas_call(
        functools.partial(rnn_kernel, unroll=unroll),
        out_shape=jax.ShapeDtypeStruct((B_pad, O_pad), jnp.float32),
        grid=grid,
        in_specs=[
            pl.BlockSpec((T, tb, H8), lambda b: (0, b, 0)),            # gin (batch-tiled)
            pl.BlockSpec((H2, H8), lambda b: (0, 0), **w_mode),        # wrec (invariant)
            pl.BlockSpec((T, H2, O_pad), lambda b: (0, 0, 0), **w_mode),  # wk  (invariant)
            pl.BlockSpec((1, O_pad), lambda b: (0, 0), **w_mode),      # blin (invariant)
        ],
        out_specs=pl.BlockSpec((tb, O_pad), lambda b: (b, 0)),
        compiler_params=pltpu.CompilerParams(
            dimension_semantics=("parallel",),
            vmem_limit_bytes=48 * 1024 * 1024,
        ),
    )(gin, packed["wrec"], packed["wk"], packed["blin"])

    return out[:B, :O]


def rnn_reference(x, params):
    """Pure-JAX reference mirroring torch.nn.LSTM(bidirectional, batch_first) + Linear."""
    B, T, D = x.shape
    H = params["w_hh_f"].shape[1]

    def run_dir(xs, wih, whh, bih, bhh):
        def step(carry, x_t):
            h, c = carry
            gates = x_t @ wih.T + bih + h @ whh.T + bhh
            i = jax.nn.sigmoid(gates[:, :H])
            f = jax.nn.sigmoid(gates[:, H:2 * H])
            g = jnp.tanh(gates[:, 2 * H:3 * H])
            o = jax.nn.sigmoid(gates[:, 3 * H:])
            c = f * c + i * g
            h = o * jnp.tanh(c)
            return (h, c), h
        h0 = jnp.zeros((B, H), jnp.float32)
        _, hs = lax.scan(step, (h0, h0), jnp.transpose(xs, (1, 0, 2)))
        return jnp.transpose(hs, (1, 0, 2))  # (B, T, H)

    out_f = run_dir(x, params["w_ih_f"], params["w_hh_f"], params["b_ih_f"], params["b_hh_f"])
    out_b = run_dir(x[:, ::-1], params["w_ih_b"], params["w_hh_b"],
                    params["b_ih_b"], params["b_hh_b"])[:, ::-1]
    out = jnp.concatenate([out_f, out_b], axis=-1)   # (B, T, 2H)
    flat = out.reshape(B, -1)
    return flat @ params["w_lin"].T + params["b_lin"]


if __name__ == "__main__":
    # Small shapes consistent with the module's forward:
    # input is (BATCH_SIZE, EMBEDDING_SIZE, input_size) -> seq_len == EMBEDDING_SIZE.
    BATCH_SIZE = 2
    EMBEDDING_SIZE = 8    # sequence length
    INPUT_SIZE = 16       # per-step feature dim (600 in the original, shrunk here)
    HIDDEN_SIZE = 32
    OUTPUT_SIZE = 8

    key = jax.random.PRNGKey(0)
    kx, kp = jax.random.split(key)
    x = jax.random.normal(kx, (BATCH_SIZE, EMBEDDING_SIZE, INPUT_SIZE), jnp.float32)
    params = init_params(kp, INPUT_SIZE, HIDDEN_SIZE, OUTPUT_SIZE, EMBEDDING_SIZE)

    y_ref = rnn_reference(x, params)

    # Exact path (f32 matmul operands everywhere): tight correctness check.
    packed_f32 = pack_params(params, seq_len=EMBEDDING_SIZE, matmul_dtype=jnp.float32)
    y32 = rnn_pallas(x, packed_f32)
    jax.block_until_ready(y32)
    assert y32.shape == (BATCH_SIZE, OUTPUT_SIZE)
    assert jnp.max(jnp.abs(y32 - y_ref)) < 2e-3, "f32 Pallas kernel disagrees with JAX reference"

    # Default path: bf16 operands for the hoisted input projection / Linear head
    # (recurrent weights and gate math stay f32), as recommended for v5e/v6e/v7x MXU.
    packed_bf16 = pack_params(params, seq_len=EMBEDDING_SIZE)   # default bfloat16
    y16 = rnn_pallas(x, packed_bf16)
    jax.block_until_ready(y16)
    assert y16.shape == (BATCH_SIZE, OUTPUT_SIZE)
    assert jnp.max(jnp.abs(y16 - y_ref)) < 5e-2, "bf16 Pallas kernel disagrees with JAX reference"

    print("KERNEL_OK")
</pallas_src>

<mosaic_0001>
module attributes {stable_mosaic.version = 11 : i64} {
  func.func @rnn_kernel(%arg0: i32, %arg1: memref<8x8x256xf32, #tpu.memory_space<vmem>>, %arg2: memref<64x256xf32, #tpu.memory_space<vmem>>, %arg3: memref<8x64x128xf32, #tpu.memory_space<vmem>>, %arg4: memref<1x128xf32, #tpu.memory_space<vmem>>, %arg5: memref<8x128xf32, #tpu.memory_space<vmem>>) attributes {dimension_semantics = [#tpu.dimension_semantics<parallel>], iteration_bounds = array<i64: 1>, scalar_prefetch = 0 : i64, scratch_operands = 0 : i64, tpu.core_type = #tpu.core_type<tc>, window_params = [{transform_indices = @transform_0, window_bounds = array<i64: 8, 8, 256>}, {pipeline_mode = #tpu.pipeline_mode<synchronous>, transform_indices = @transform_1, window_bounds = array<i64: 64, 256>}, {pipeline_mode = #tpu.pipeline_mode<synchronous>, transform_indices = @transform_2, window_bounds = array<i64: 8, 64, 128>}, {pipeline_mode = #tpu.pipeline_mode<synchronous>, transform_indices = @transform_3, window_bounds = array<i64: 1, 128>}, {transform_indices = @transform_4, window_bounds = array<i64: 8, 128>}]} {
    %c0 = arith.constant 0 : index
    %c0_0 = arith.constant 0 : index
    %0 = vector.load %arg2[%c0, %c0_0] : memref<64x256xf32, #tpu.memory_space<vmem>>, vector<64x256xf32>
    %cst = arith.constant 0.000000e+00 : f32
    %1 = vector.broadcast %cst : f32 to vector<8x64xf32>
    %cst_1 = arith.constant 0.000000e+00 : f32
    %2 = vector.broadcast %cst_1 : f32 to vector<8x64xf32>
    %cst_2 = arith.constant 0.000000e+00 : f32
    %3 = vector.broadcast %cst_2 : f32 to vector<8x128xf32>
    %c0_i32 = arith.constant 0 : i32
    %4 = arith.index_cast %c0_i32 : i32 to index
    %c0_3 = arith.constant 0 : index
    %c0_4 = arith.constant 0 : index
    %5 = vector.load %arg1[%4, %c0_3, %c0_4] : memref<8x8x256xf32, #tpu.memory_space<vmem>>, vector<1x8x256xf32>
    %6 = vector.shape_cast %5 : vector<1x8x256xf32> to vector<8x256xf32>
    %cst_5 = arith.constant dense<0.000000e+00> : vector<8x256xf32>
    %7 = tpu.matmul %1, %0, %cst_5 {dimension_numbers = #tpu.dot_dimension_numbers<[1], [0], [0], [1], [0, 0, 1, 1], [], []>} : vector<8x64xf32>, vector<64x256xf32>, vector<8x256xf32> -> vector<8x256xf32>
    %8 = arith.addf %6, %7 : vector<8x256xf32>
    %9 = vector.extract_strided_slice %8 {offsets = [0, 0], sizes = [8, 64], strides = [1, 1]} : vector<8x256xf32> to vector<8x64xf32>
    %10 = arith.negf %9 : vector<8x64xf32>
    %11 = math.exp %10 : vector<8x64xf32>
    %cst_6 = arith.constant 1.000000e+00 : f32
    %12 = vector.broadcast %cst_6 : f32 to vector<8x64xf32>
    %13 = arith.addf %12, %11 : vector<8x64xf32>
    %14 = arith.divf %12, %13 : vector<8x64xf32>
    %15 = vector.extract_strided_slice %8 {offsets = [0, 64], sizes = [8, 64], strides = [1, 1]} : vector<8x256xf32> to vector<8x64xf32>
    %16 = arith.negf %15 : vector<8x64xf32>
    %17 = math.exp %16 : vector<8x64xf32>
    %cst_7 = arith.constant 1.000000e+00 : f32
    %18 = vector.broadcast %cst_7 : f32 to vector<8x64xf32>
    %19 = arith.addf %18, %17 : vector<8x64xf32>
    %20 = arith.divf %18, %19 : vector<8x64xf32>
    %21 = vector.extract_strided_slice %8 {offsets = [0, 128], sizes = [8, 64], strides = [1, 1]} : vector<8x256xf32> to vector<8x64xf32>
    %22 = math.tanh %21 : vector<8x64xf32>
    %23 = vector.extract_strided_slice %8 {offsets = [0, 192], sizes = [8, 64], strides = [1, 1]} : vector<8x256xf32> to vector<8x64xf32>
    %24 = arith.negf %23 : vector<8x64xf32>
    %25 = math.exp %24 : vector<8x64xf32>
    %cst_8 = arith.constant 1.000000e+00 : f32
    %26 = vector.broadcast %cst_8 : f32 to vector<8x64xf32>
    %27 = arith.addf %26, %25 : vector<8x64xf32>
    %28 = arith.divf %26, %27 : vector<8x64xf32>
    %29 = arith.mulf %20, %2 : vector<8x64xf32>
    %30 = arith.mulf %14, %22 : vector<8x64xf32>
    %31 = arith.addf %29, %30 : vector<8x64xf32>
    %32 = math.tanh %31 : vector<8x64xf32>
    %33 = arith.mulf %28, %32 : vector<8x64xf32>
    %34 = arith.index_cast %c0_i32 : i32 to index
    %c0_9 = arith.constant 0 : index
    %c0_10 = arith.constant 0 : index
    %35 = vector.load %arg3[%34, %c0_9, %c0_10] : memref<8x64x128xf32, #tpu.memory_space<vmem>>, vector<1x64x128xf32>
    %36 = vector.shape_cast %35 : vector<1x64x128xf32> to vector<64x128xf32>
    %cst_11 = arith.constant dense<0.000000e+00> : vector<8x128xf32>
    %37 = tpu.matmul %33, %36, %cst_11 {dimension_numbers = #tpu.dot_dimension_numbers<[1], [0], [0], [1], [0, 0, 1, 1], [], []>} : vector<8x64xf32>, vector<64x128xf32>, vector<8x128xf32> -> vector<8x128xf32>
    %38 = arith.addf %3, %37 : vector<8x128xf32>
    %c1_i32 = arith.constant 1 : i32
    %39 = arith.index_cast %c1_i32 : i32 to index
    %c0_12 = arith.constant 0 : index
    %c0_13 = arith.constant 0 : index
    %40 = vector.load %arg1[%39, %c0_12, %c0_13] : memref<8x8x256xf32, #tpu.memory_space<vmem>>, vector<1x8x256xf32>
    %41 = vector.shape_cast %40 : vector<1x8x256xf32> to vector<8x256xf32>
    %cst_14 = arith.constant dense<0.000000e+00> : vector<8x256xf32>
    %42 = tpu.matmul %33, %0, %cst_14 {dimension_numbers = #tpu.dot_dimension_numbers<[1], [0], [0], [1], [0, 0, 1, 1], [], []>} : vector<8x64xf32>, vector<64x256xf32>, vector<8x256xf32> -> vector<8x256xf32>
    %43 = arith.addf %41, %42 : vector<8x256xf32>
    %44 = vector.extract_strided_slice %43 {offsets = [0, 0], sizes = [8, 64], strides = [1, 1]} : vector<8x256xf32> to vector<8x64xf32>
    %45 = arith.negf %44 : vector<8x64xf32>
    %46 = math.exp %45 : vector<8x64xf32>
    %cst_15 = arith.constant 1.000000e+00 : f32
    %47 = vector.broadcast %cst_15 : f32 to vector<8x64xf32>
    %48 = arith.addf %47, %46 : vector<8x64xf32>
    %49 = arith.divf %47, %48 : vector<8x64xf32>
    %50 = vector.extract_strided_slice %43 {offsets = [0, 64], sizes = [8, 64], strides = [1, 1]} : vector<8x256xf32> to vector<8x64xf32>
    %51 = arith.negf %50 : vector<8x64xf32>
    %52 = math.exp %51 : vector<8x64xf32>
    %cst_16 = arith.constant 1.000000e+00 : f32
    %53 = vector.broadcast %cst_16 : f32 to vector<8x64xf32>
    %54 = arith.addf %53, %52 : vector<8x64xf32>
    %55 = arith.divf %53, %54 : vector<8x64xf32>
    %56 = vector.extract_strided_slice %43 {offsets = [0, 128], sizes = [8, 64], strides = [1, 1]} : vector<8x256xf32> to vector<8x64xf32>
    %57 = math.tanh %56 : vector<8x64xf32>
    %58 = vector.extract_strided_slice %43 {offsets = [0, 192], sizes = [8, 64], strides = [1, 1]} : vector<8x256xf32> to vector<8x64xf32>
    %59 = arith.negf %58 : vector<8x64xf32>
    %60 = math.exp %59 : vector<8x64xf32>
    %cst_17 = arith.constant 1.000000e+00 : f32
    %61 = vector.broadcast %cst_17 : f32 to vector<8x64xf32>
    %62 = arith.addf %61, %60 : vector<8x64xf32>
    %63 = arith.divf %61, %62 : vector<8x64xf32>
    %64 = arith.mulf %55, %31 : vector<8x64xf32>
    %65 = arith.mulf %49, %57 : vector<8x64xf32>
    %66 = arith.addf %64, %65 : vector<8x64xf32>
    %67 = math.tanh %66 : vector<8x64xf32>
    %68 = arith.mulf %63, %67 : vector<8x64xf32>
    %69 = arith.index_cast %c1_i32 : i32 to index
    %c0_18 = arith.constant 0 : index
    %c0_19 = arith.constant 0 : index
    %70 = vector.load %arg3[%69, %c0_18, %c0_19] : memref<8x64x128xf32, #tpu.memory_space<vmem>>, vector<1x64x128xf32>
    %71 = vector.shape_cast %70 : vector<1x64x128xf32> to vector<64x128xf32>
    %cst_20 = arith.constant dense<0.000000e+00> : vector<8x128xf32>
    %72 = tpu.matmul %68, %71, %cst_20 {dimension_numbers = #tpu.dot_dimension_numbers<[1], [0], [0], [1], [0, 0, 1, 1], [], []>} : vector<8x64xf32>, vector<64x128xf32>, vector<8x128xf32> -> vector<8x128xf32>
    %73 = arith.addf %38, %72 : vector<8x128xf32>
    %c2_i32 = arith.constant 2 : i32
    %74 = arith.index_cast %c2_i32 : i32 to index
    %c0_21 = arith.constant 0 : index
    %c0_22 = arith.constant 0 : index
    %75 = vector.load %arg1[%74, %c0_21, %c0_22] : memref<8x8x256xf32, #tpu.memory_space<vmem>>, vector<1x8x256xf32>
    %76 = vector.shape_cast %75 : vector<1x8x256xf32> to vector<8x256xf32>
    %cst_23 = arith.constant dense<0.000000e+00> : vector<8x256xf32>
    %77 = tpu.matmul %68, %0, %cst_23 {dimension_numbers = #tpu.dot_dimension_numbers<[1], [0], [0], [1], [0, 0, 1, 1], [], []>} : vector<8x64xf32>, vector<64x256xf32>, vector<8x256xf32> -> vector<8x256xf32>
    %78 = arith.addf %76, %77 : vector<8x256xf32>
    %79 = vector.extract_strided_slice %78 {offsets = [0, 0], sizes = [8, 64], strides = [1, 1]} : vector<8x256xf32> to vector<8x64xf32>
    %80 = arith.negf %79 : vector<8x64xf32>
    %81 = math.exp %80 : vector<8x64xf32>
    %cst_24 = arith.constant 1.000000e+00 : f32
    %82 = vector.broadcast %cst_24 : f32 to vector<8x64xf32>
    %83 = arith.addf %82, %81 : vector<8x64xf32>
    %84 = arith.divf %82, %83 : vector<8x64xf32>
    %85 = vector.extract_strided_slice %78 {offsets = [0, 64], sizes = [8, 64], strides = [1, 1]} : vector<8x256xf32> to vector<8x64xf32>
    %86 = arith.negf %85 : vector<8x64xf32>
    %87 = math.exp %86 : vector<8x64xf32>
    %cst_25 = arith.constant 1.000000e+00 : f32
    %88 = vector.broadcast %cst_25 : f32 to vector<8x64xf32>
    %89 = arith.addf %88, %87 : vector<8x64xf32>
    %90 = arith.divf %88, %89 : vector<8x64xf32>
    %91 = vector.extract_strided_slice %78 {offsets = [0, 128], sizes = [8, 64], strides = [1, 1]} : vector<8x256xf32> to vector<8x64xf32>
    %92 = math.tanh %91 : vector<8x64xf32>
    %93 = vector.extract_strided_slice %78 {offsets = [0, 192], sizes = [8, 64], strides = [1, 1]} : vector<8x256xf32> to vector<8x64xf32>
    %94 = arith.negf %93 : vector<8x64xf32>
    %95 = math.exp %94 : vector<8x64xf32>
    %cst_26 = arith.constant 1.000000e+00 : f32
    %96 = vector.broadcast %cst_26 : f32 to vector<8x64xf32>
    %97 = arith.addf %96, %95 : vector<8x64xf32>
    %98 = arith.divf %96, %97 : vector<8x64xf32>
    %99 = arith.mulf %90, %66 : vector<8x64xf32>
    %100 = arith.mulf %84, %92 : vector<8x64xf32>
    %101 = arith.addf %99, %100 : vector<8x64xf32>
    %102 = math.tanh %101 : vector<8x64xf32>
    %103 = arith.mulf %98, %102 : vector<8x64xf32>
    %104 = arith.index_cast %c2_i32 : i32 to index
    %c0_27 = arith.constant 0 : index
    %c0_28 = arith.constant 0 : index
    %105 = vector.load %arg3[%104, %c0_27, %c0_28] : memref<8x64x128xf32, #tpu.memory_space<vmem>>, vector<1x64x128xf32>
    %106 = vector.shape_cast %105 : vector<1x64x128xf32> to vector<64x128xf32>
    %cst_29 = arith.constant dense<0.000000e+00> : vector<8x128xf32>
    %107 = tpu.matmul %103, %106, %cst_29 {dimension_numbers = #tpu.dot_dimension_numbers<[1], [0], [0], [1], [0, 0, 1, 1], [], []>} : vector<8x64xf32>, vector<64x128xf32>, vector<8x128xf32> -> vector<8x128xf32>
    %108 = arith.addf %73, %107 : vector<8x128xf32>
    %c3_i32 = arith.constant 3 : i32
    %109 = arith.index_cast %c3_i32 : i32 to index
    %c0_30 = arith.constant 0 : index
    %c0_31 = arith.constant 0 : index
    %110 = vector.load %arg1[%109, %c0_30, %c0_31] : memref<8x8x256xf32, #tpu.memory_space<vmem>>, vector<1x8x256xf32>
    %111 = vector.shape_cast %110 : vector<1x8x256xf32> to vector<8x256xf32>
    %cst_32 = arith.constant dense<0.000000e+00> : vector<8x256xf32>
    %112 = tpu.matmul %103, %0, %cst_32 {dimension_numbers = #tpu.dot_dimension_numbers<[1], [0], [0], [1], [0, 0, 1, 1], [], []>} : vector<8x64xf32>, vector<64x256xf32>, vector<8x256xf32> -> vector<8x256xf32>
    %113 = arith.addf %111, %112 : vector<8x256xf32>
    %114 = vector.extract_strided_slice %113 {offsets = [0, 0], sizes = [8, 64], strides = [1, 1]} : vector<8x256xf32> to vector<8x64xf32>
    %115 = arith.negf %114 : vector<8x64xf32>
    %116 = math.exp %115 : vector<8x64xf32>
    %cst_33 = arith.constant 1.000000e+00 : f32
    %117 = vector.broadcast %cst_33 : f32 to vector<8x64xf32>
    %118 = arith.addf %117, %116 : vector<8x64xf32>
    %119 = arith.divf %117, %118 : vector<8x64xf32>
    %120 = vector.extract_strided_slice %113 {offsets = [0, 64], sizes = [8, 64], strides = [1, 1]} : vector<8x256xf32> to vector<8x64xf32>
    %121 = arith.negf %120 : vector<8x64xf32>
    %122 = math.exp %121 : vector<8x64xf32>
    %cst_34 = arith.constant 1.000000e+00 : f32
    %123 = vector.broadcast %cst_34 : f32 to vector<8x64xf32>
    %124 = arith.addf %123, %122 : vector<8x64xf32>
    %125 = arith.divf %123, %124 : vector<8x64xf32>
    %126 = vector.extract_strided_slice %113 {offsets = [0, 128], sizes = [8, 64], strides = [1, 1]} : vector<8x256xf32> to vector<8x64xf32>
    %127 = math.tanh %126 : vector<8x64xf32>
    %128 = vector.extract_strided_slice %113 {offsets = [0, 192], sizes = [8, 64], strides = [1, 1]} : vector<8x256xf32> to vector<8x64xf32>
    %129 = arith.negf %128 : vector<8x64xf32>
    %130 = math.exp %129 : vector<8x64xf32>
    %cst_35 = arith.constant 1.000000e+00 : f32
    %131 = vector.broadcast %cst_35 : f32 to vector<8x64xf32>
    %132 = arith.addf %131, %130 : vector<8x64xf32>
    %133 = arith.divf %131, %132 : vector<8x64xf32>
    %134 = arith.mulf %125, %101 : vector<8x64xf32>
    %135 = arith.mulf %119, %127 : vector<8x64xf32>
    %136 = arith.addf %134, %135 : vector<8x64xf32>
    %137 = math.tanh %136 : vector<8x64xf32>
    %138 = arith.mulf %133, %137 : vector<8x64xf32>
    %139 = arith.index_cast %c3_i32 : i32 to index
    %c0_36 = arith.constant 0 : index
    %c0_37 = arith.constant 0 : index
    %140 = vector.load %arg3[%139, %c0_36, %c0_37] : memref<8x64x128xf32, #tpu.memory_space<vmem>>, vector<1x64x128xf32>
    %141 = vector.shape_cast %140 : vector<1x64x128xf32> to vector<64x128xf32>
    %cst_38 = arith.constant dense<0.000000e+00> : vector<8x128xf32>
    %142 = tpu.matmul %138, %141, %cst_38 {dimension_numbers = #tpu.dot_dimension_numbers<[1], [0], [0], [1], [0, 0, 1, 1], [], []>} : vector<8x64xf32>, vector<64x128xf32>, vector<8x128xf32> -> vector<8x128xf32>
    %143 = arith.addf %108, %142 : vector<8x128xf32>
    %c4_i32 = arith.constant 4 : i32
    %144 = arith.index_cast %c4_i32 : i32 to index
    %c0_39 = arith.constant 0 : index
    %c0_40 = arith.constant 0 : index
    %145 = vector.load %arg1[%144, %c0_39, %c0_40] : memref<8x8x256xf32, #tpu.memory_space<vmem>>, vector<1x8x256xf32>
    %146 = vector.shape_cast %145 : vector<1x8x256xf32> to vector<8x256xf32>
    %cst_41 = arith.constant dense<0.000000e+00> : vector<8x256xf32>
    %147 = tpu.matmul %138, %0, %cst_41 {dimension_numbers = #tpu.dot_dimension_numbers<[1], [0], [0], [1], [0, 0, 1, 1], [], []>} : vector<8x64xf32>, vector<64x256xf32>, vector<8x256xf32> -> vector<8x256xf32>
    %148 = arith.addf %146, %147 : vector<8x256xf32>
    %149 = vector.extract_strided_slice %148 {offsets = [0, 0], sizes = [8, 64], strides = [1, 1]} : vector<8x256xf32> to vector<8x64xf32>
    %150 = arith.negf %149 : vector<8x64xf32>
    %151 = math.exp %150 : vector<8x64xf32>
    %cst_42 = arith.constant 1.000000e+00 : f32
    %152 = vector.broadcast %cst_42 : f32 to vector<8x64xf32>
    %153 = arith.addf %152, %151 : vector<8x64xf32>
    %154 = arith.divf %152, %153 : vector<8x64xf32>
    %155 = vector.extract_strided_slice %148 {offsets = [0, 64], sizes = [8, 64], strides = [1, 1]} : vector<8x256xf32> to vector<8x64xf32>
    %156 = arith.negf %155 : vector<8x64xf32>
    %157 = math.exp %156 : vector<8x64xf32>
    %cst_43 = arith.constant 1.000000e+00 : f32
    %158 = vector.broadcast %cst_43 : f32 to vector<8x64xf32>
    %159 = arith.addf %158, %157 : vector<8x64xf32>
    %160 = arith.divf %158, %159 : vector<8x64xf32>
    %161 = vector.extract_strided_slice %148 {offsets = [0, 128], sizes = [8, 64], strides = [1, 1]} : vector<8x256xf32> to vector<8x64xf32>
    %162 = math.tanh %161 : vector<8x64xf32>
    %163 = vector.extract_strided_slice %148 {offsets = [0, 192], sizes = [8, 64], strides = [1, 1]} : vector<8x256xf32> to vector<8x64xf32>
    %164 = arith.negf %163 : vector<8x64xf32>
    %165 = math.exp %164 : vector<8x64xf32>
    %cst_44 = arith.constant 1.000000e+00 : f32
    %166 = vector.broadcast %cst_44 : f32 to vector<8x64xf32>
    %167 = arith.addf %166, %165 : vector<8x64xf32>
    %168 = arith.divf %166, %167 : vector<8x64xf32>
    %169 = arith.mulf %160, %136 : vector<8x64xf32>
    %170 = arith.mulf %154, %162 : vector<8x64xf32>
    %171 = arith.addf %169, %170 : vector<8x64xf32>
    %172 = math.tanh %171 : vector<8x64xf32>
    %173 = arith.mulf %168, %172 : vector<8x64xf32>
    %174 = arith.index_cast %c4_i32 : i32 to index
    %c0_45 = arith.constant 0 : index
    %c0_46 = arith.constant 0 : index
    %175 = vector.load %arg3[%174, %c0_45, %c0_46] : memref<8x64x128xf32, #tpu.memory_space<vmem>>, vector<1x64x128xf32>
    %176 = vector.shape_cast %175 : vector<1x64x128xf32> to vector<64x128xf32>
    %cst_47 = arith.constant dense<0.000000e+00> : vector<8x128xf32>
    %177 = tpu.matmul %173, %176, %cst_47 {dimension_numbers = #tpu.dot_dimension_numbers<[1], [0], [0], [1], [0, 0, 1, 1], [], []>} : vector<8x64xf32>, vector<64x128xf32>, vector<8x128xf32> -> vector<8x128xf32>
    %178 = arith.addf %143, %177 : vector<8x128xf32>
    %c5_i32 = arith.constant 5 : i32
    %179 = arith.index_cast %c5_i32 : i32 to index
    %c0_48 = arith.constant 0 : index
    %c0_49 = arith.constant 0 : index
    %180 = vector.load %arg1[%179, %c0_48, %c0_49] : memref<8x8x256xf32, #tpu.memory_space<vmem>>, vector<1x8x256xf32>
    %181 = vector.shape_cast %180 : vector<1x8x256xf32> to vector<8x256xf32>
    %cst_50 = arith.constant dense<0.000000e+00> : vector<8x256xf32>
    %182 = tpu.matmul %173, %0, %cst_50 {dimension_numbers = #tpu.dot_dimension_numbers<[1], [0], [0], [1], [0, 0, 1, 1], [], []>} : vector<8x64xf32>, vector<64x256xf32>, vector<8x256xf32> -> vector<8x256xf32>
    %183 = arith.addf %181, %182 : vector<8x256xf32>
    %184 = vector.extract_strided_slice %183 {offsets = [0, 0], sizes = [8, 64], strides = [1, 1]} : vector<8x256xf32> to vector<8x64xf32>
    %185 = arith.negf %184 : vector<8x64xf32>
    %186 = math.exp %185 : vector<8x64xf32>
    %cst_51 = arith.constant 1.000000e+00 : f32
    %187 = vector.broadcast %cst_51 : f32 to vector<8x64xf32>
    %188 = arith.addf %187, %186 : vector<8x64xf32>
    %189 = arith.divf %187, %188 : vector<8x64xf32>
    %190 = vector.extract_strided_slice %183 {offsets = [0, 64], sizes = [8, 64], strides = [1, 1]} : vector<8x256xf32> to vector<8x64xf32>
    %191 = arith.negf %190 : vector<8x64xf32>
    %192 = math.exp %191 : vector<8x64xf32>
    %cst_52 = arith.constant 1.000000e+00 : f32
    %193 = vector.broadcast %cst_52 : f32 to vector<8x64xf32>
    %194 = arith.addf %193, %192 : vector<8x64xf32>
    %195 = arith.divf %193, %194 : vector<8x64xf32>
    %196 = vector.extract_strided_slice %183 {offsets = [0, 128], sizes = [8, 64], strides = [1, 1]} : vector<8x256xf32> to vector<8x64xf32>
    %197 = math.tanh %196 : vector<8x64xf32>
    %198 = vector.extract_strided_slice %183 {offsets = [0, 192], sizes = [8, 64], strides = [1, 1]} : vector<8x256xf32> to vector<8x64xf32>
    %199 = arith.negf %198 : vector<8x64xf32>
    %200 = math.exp %199 : vector<8x64xf32>
    %cst_53 = arith.constant 1.000000e+00 : f32
    %201 = vector.broadcast %cst_53 : f32 to vector<8x64xf32>
    %202 = arith.addf %201, %200 : vector<8x64xf32>
    %203 = arith.divf %201, %202 : vector<8x64xf32>
    %204 = arith.mulf %195, %171 : vector<8x64xf32>
    %205 = arith.mulf %189, %197 : vector<8x64xf32>
    %206 = arith.addf %204, %205 : vector<8x64xf32>
    %207 = math.tanh %206 : vector<8x64xf32>
    %208 = arith.mulf %203, %207 : vector<8x64xf32>
    %209 = arith.index_cast %c5_i32 : i32 to index
    %c0_54 = arith.constant 0 : index
    %c0_55 = arith.constant 0 : index
    %210 = vector.load %arg3[%209, %c0_54, %c0_55] : memref<8x64x128xf32, #tpu.memory_space<vmem>>, vector<1x64x128xf32>
    %211 = vector.shape_cast %210 : vector<1x64x128xf32> to vector<64x128xf32>
    %cst_56 = arith.constant dense<0.000000e+00> : vector<8x128xf32>
    %212 = tpu.matmul %208, %211, %cst_56 {dimension_numbers = #tpu.dot_dimension_numbers<[1], [0], [0], [1], [0, 0, 1, 1], [], []>} : vector<8x64xf32>, vector<64x128xf32>, vector<8x128xf32> -> vector<8x128xf32>
    %213 = arith.addf %178, %212 : vector<8x128xf32>
    %c6_i32 = arith.constant 6 : i32
    %214 = arith.index_cast %c6_i32 : i32 to index
    %c0_57 = arith.constant 0 : index
    %c0_58 = arith.constant 0 : index
    %215 = vector.load %arg1[%214, %c0_57, %c0_58] : memref<8x8x256xf32, #tpu.memory_space<vmem>>, vector<1x8x256xf32>
    %216 = vector.shape_cast %215 : vector<1x8x256xf32> to vector<8x256xf32>
    %cst_59 = arith.constant dense<0.000000e+00> : vector<8x256xf32>
    %217 = tpu.matmul %208, %0, %cst_59 {dimension_numbers = #tpu.dot_dimension_numbers<[1], [0], [0], [1], [0, 0, 1, 1], [], []>} : vector<8x64xf32>, vector<64x256xf32>, vector<8x256xf32> -> vector<8x256xf32>
    %218 = arith.addf %216, %217 : vector<8x256xf32>
    %219 = vector.extract_strided_slice %218 {offsets = [0, 0], sizes = [8, 64], strides = [1, 1]} : vector<8x256xf32> to vector<8x64xf32>
    %220 = arith.negf %219 : vector<8x64xf32>
    %221 = math.exp %220 : vector<8x64xf32>
    %cst_60 = arith.constant 1.000000e+00 : f32
    %222 = vector.broadcast %cst_60 : f32 to vector<8x64xf32>
    %223 = arith.addf %222, %221 : vector<8x64xf32>
    %224 = arith.divf %222, %223 : vector<8x64xf32>
    %225 = vector.extract_strided_slice %218 {offsets = [0, 64], sizes = [8, 64], strides = [1, 1]} : vector<8x256xf32> to vector<8x64xf32>
    %226 = arith.negf %225 : vector<8x64xf32>
    %227 = math.exp %226 : vector<8x64xf32>
    %cst_61 = arith.constant 1.000000e+00 : f32
    %228 = vector.broadcast %cst_61 : f32 to vector<8x64xf32>
    %229 = arith.addf %228, %227 : vector<8x64xf32>
    %230 = arith.divf %228, %229 : vector<8x64xf32>
    %231 = vector.extract_strided_slice %218 {offsets = [0, 128], sizes = [8, 64], strides = [1, 1]} : vector<8x256xf32> to vector<8x64xf32>
    %232 = math.tanh %231 : vector<8x64xf32>
    %233 = vector.extract_strided_slice %218 {offsets = [0, 192], sizes = [8, 64], strides = [1, 1]} : vector<8x256xf32> to vector<8x64xf32>
    %234 = arith.negf %233 : vector<8x64xf32>
    %235 = math.exp %234 : vector<8x64xf32>
    %cst_62 = arith.constant 1.000000e+00 : f32
    %236 = vector.broadcast %cst_62 : f32 to vector<8x64xf32>
    %237 = arith.addf %236, %235 : vector<8x64xf32>
    %238 = arith.divf %236, %237 : vector<8x64xf32>
    %239 = arith.mulf %230, %206 : vector<8x64xf32>
    %240 = arith.mulf %224, %232 : vector<8x64xf32>
    %241 = arith.addf %239, %240 : vector<8x64xf32>
    %242 = math.tanh %241 : vector<8x64xf32>
    %243 = arith.mulf %238, %242 : vector<8x64xf32>
    %244 = arith.index_cast %c6_i32 : i32 to index
    %c0_63 = arith.constant 0 : index
    %c0_64 = arith.constant 0 : index
    %245 = vector.load %arg3[%244, %c0_63, %c0_64] : memref<8x64x128xf32, #tpu.memory_space<vmem>>, vector<1x64x128xf32>
    %246 = vector.shape_cast %245 : vector<1x64x128xf32> to vector<64x128xf32>
    %cst_65 = arith.constant dense<0.000000e+00> : vector<8x128xf32>
    %247 = tpu.matmul %243, %246, %cst_65 {dimension_numbers = #tpu.dot_dimension_numbers<[1], [0], [0], [1], [0, 0, 1, 1], [], []>} : vector<8x64xf32>, vector<64x128xf32>, vector<8x128xf32> -> vector<8x128xf32>
    %248 = arith.addf %213, %247 : vector<8x128xf32>
    %c7_i32 = arith.constant 7 : i32
    %249 = arith.index_cast %c7_i32 : i32 to index
    %c0_66 = arith.constant 0 : index
    %c0_67 = arith.constant 0 : index
    %250 = vector.load %arg1[%249, %c0_66, %c0_67] : memref<8x8x256xf32, #tpu.memory_space<vmem>>, vector<1x8x256xf32>
    %251 = vector.shape_cast %250 : vector<1x8x256xf32> to vector<8x256xf32>
    %cst_68 = arith.constant dense<0.000000e+00> : vector<8x256xf32>
    %252 = tpu.matmul %243, %0, %cst_68 {dimension_numbers = #tpu.dot_dimension_numbers<[1], [0], [0], [1], [0, 0, 1, 1], [], []>} : vector<8x64xf32>, vector<64x256xf32>, vector<8x256xf32> -> vector<8x256xf32>
    %253 = arith.addf %251, %252 : vector<8x256xf32>
    %254 = vector.extract_strided_slice %253 {offsets = [0, 0], sizes = [8, 64], strides = [1, 1]} : vector<8x256xf32> to vector<8x64xf32>
    %255 = arith.negf %254 : vector<8x64xf32>
    %256 = math.exp %255 : vector<8x64xf32>
    %cst_69 = arith.constant 1.000000e+00 : f32
    %257 = vector.broadcast %cst_69 : f32 to vector<8x64xf32>
    %258 = arith.addf %257, %256 : vector<8x64xf32>
    %259 = arith.divf %257, %258 : vector<8x64xf32>
    %260 = vector.extract_strided_slice %253 {offsets = [0, 64], sizes = [8, 64], strides = [1, 1]} : vector<8x256xf32> to vector<8x64xf32>
    %261 = arith.negf %260 : vector<8x64xf32>
    %262 = math.exp %261 : vector<8x64xf32>
    %cst_70 = arith.constant 1.000000e+00 : f32
    %263 = vector.broadcast %cst_70 : f32 to vector<8x64xf32>
    %264 = arith.addf %263, %262 : vector<8x64xf32>
    %265 = arith.divf %263, %264 : vector<8x64xf32>
    %266 = vector.extract_strided_slice %253 {offsets = [0, 128], sizes = [8, 64], strides = [1, 1]} : vector<8x256xf32> to vector<8x64xf32>
    %267 = math.tanh %266 : vector<8x64xf32>
    %268 = vector.extract_strided_slice %253 {offsets = [0, 192], sizes = [8, 64], strides = [1, 1]} : vector<8x256xf32> to vector<8x64xf32>
    %269 = arith.negf %268 : vector<8x64xf32>
    %270 = math.exp %269 : vector<8x64xf32>
    %cst_71 = arith.constant 1.000000e+00 : f32
    %271 = vector.broadcast %cst_71 : f32 to vector<8x64xf32>
    %272 = arith.addf %271, %270 : vector<8x64xf32>
    %273 = arith.divf %271, %272 : vector<8x64xf32>
    %274 = arith.mulf %265, %241 : vector<8x64xf32>
    %275 = arith.mulf %259, %267 : vector<8x64xf32>
    %276 = arith.addf %274, %275 : vector<8x64xf32>
    %277 = math.tanh %276 : vector<8x64xf32>
    %278 = arith.mulf %273, %277 : vector<8x64xf32>
    %279 = arith.index_cast %c7_i32 : i32 to index
    %c0_72 = arith.constant 0 : index
    %c0_73 = arith.constant 0 : index
    %280 = vector.load %arg3[%279, %c0_72, %c0_73] : memref<8x64x128xf32, #tpu.memory_space<vmem>>, vector<1x64x128xf32>
    %281 = vector.shape_cast %280 : vector<1x64x128xf32> to vector<64x128xf32>
    %cst_74 = arith.constant dense<0.000000e+00> : vector<8x128xf32>
    %282 = tpu.matmul %278, %281, %cst_74 {dimension_numbers = #tpu.dot_dimension_numbers<[1], [0], [0], [1], [0, 0, 1, 1], [], []>} : vector<8x64xf32>, vector<64x128xf32>, vector<8x128xf32> -> vector<8x128xf32>
    %283 = arith.addf %248, %282 : vector<8x128xf32>
    %c8_i32 = arith.constant 8 : i32
    %c0_75 = arith.constant 0 : index
    %c0_76 = arith.constant 0 : index
    %284 = vector.load %arg4[%c0_75, %c0_76] : memref<1x128xf32, #tpu.memory_space<vmem>>, vector<1x128xf32>
    %285 = vector.broadcast %284 : vector<1x128xf32> to vector<8x128xf32>
    %286 = arith.addf %283, %285 : vector<8x128xf32>
    %c0_77 = arith.constant 0 : index
    %c0_78 = arith.constant 0 : index
    %287 = vector.load %arg5[%c0_77, %c0_78] : memref<8x128xf32, #tpu.memory_space<vmem>>, vector<8x128xf32>
    tpu.vector_store %arg5[%c0_77, %c0_78], %286 {strides = array<i32>} : memref<8x128xf32, #tpu.memory_space<vmem>>, vector<8x128xf32>,
    return
  }
  func.func @transform_0(%arg0: i32) -> (i32, i32, i32) {
    %c0_i32 = arith.constant 0 : i32
    %c0_i32_0 = arith.constant 0 : i32
    %c0_i32_1 = arith.constant 0 : i32
    return %c0_i32, %arg0, %c0_i32_0 : i32, i32, i32
  }
  func.func @transform_1(%arg0: i32) -> (i32, i32) {
    %c0_i32 = arith.constant 0 : i32
    %c0_i32_0 = arith.constant 0 : i32
    %c0_i32_1 = arith.constant 0 : i32
    return %c0_i32, %c0_i32_0 : i32, i32
  }
  func.func @transform_2(%arg0: i32) -> (i32, i32, i32) {
    %c0_i32 = arith.constant 0 : i32
    %c0_i32_0 = arith.constant 0 : i32
    %c0_i32_1 = arith.constant 0 : i32
    %c0_i32_2 = arith.constant 0 : i32
    return %c0_i32, %c0_i32_0, %c0_i32_1 : i32, i32, i32
  }
  func.func @transform_3(%arg0: i32) -> (i32, i32) {
    %c0_i32 = arith.constant 0 : i32
    %c0_i32_0 = arith.constant 0 : i32
    %c0_i32_1 = arith.constant 0 : i32
    return %c0_i32, %c0_i32_0 : i32, i32
  }
  func.func @transform_4(%arg0: i32) -> (i32, i32) {
    %c0_i32 = arith.constant 0 : i32
    %c0_i32_0 = arith.constant 0 : i32
    return %arg0, %c0_i32 : i32, i32
  }
}

</mosaic_0001>

<llo_original>
// kernel: tpu_custom_call.1
$region0: #{tpu_custom_call.1}
  #allocation0 [shape = 'u32[]', space=smem, size = 0x4, offset = 0x4, fixed_abs, tag = 'smem constant byte address 0x4 - core index']
  #allocation1 [shape = 'u32[144,128]{1,0:T(1,128)}', space=vmem, size = 0x12000, scoped, tag = 'internal scratch']
  %s0 = inlined_call_operand.hbm [shape: f32[8,8,256], index: 0, kind: input, shape index: {}]
  %s1 = inlined_call_operand.hbm [shape: f32[64,256], index: 1, kind: input, shape index: {}]
  %s2 = inlined_call_operand.hbm [shape: f32[8,64,128], index: 2, kind: input, shape index: {}]
  %s3 = inlined_call_operand.vmem [shape: f32[1,128], index: 3, kind: input, shape index: {}]
  %s4 = inlined_call_operand.hbm [shape: f32[8,128], index: 4, kind: output, shape index: {}]
  %s5 = sld [smem:[#allocation0]]
  $region38: #{tpu_custom_call.1} parent=0
    _
  %s7 = ssub.s32 1, %s5
  %s8 = scalar_select 0, %s7, %s5
  $region1: #{tpu_custom_call.1} parent=0
    #allocation2 [shape = 'u8[65536]{0}', space=vmem, size = 0x10000, scoped, tag = 'input window, operand 0, single buffered']
    #allocation3 [shape = 's32[1]{0}', space=sflag, size = 0x4, scoped, tag = 'scoped memory for tpu_custom_call.1']
    #allocation4 [shape = 's32[1]{0}', space=sflag, size = 0x4, scoped, tag = 'scoped memory for tpu_custom_call.1']
    #allocation5 [shape = 'u8[65536]{0}', space=vmem, size = 0x10000, scoped, tag = 'input window, operand 1, single buffered']
    #allocation6 [shape = 's32[1]{0}', space=sflag, size = 0x4, scoped, tag = 'scoped memory for tpu_custom_call.1']
    #allocation7 [shape = 'u8[262144]{0}', space=vmem, size = 0x40000, scoped, tag = 'input window, operand 2, single buffered']
    #allocation8 [shape = 'u8[4096]{0}', space=vmem, size = 0x1000, scoped, tag = 'output window, operand 0, single buffered']
    %9 = vsyncpa [#allocation3], 0
    %10 = vsyncpa [#allocation6], 0
    %11 = vsyncpa [#allocation4], 0
    // Predicated region
    $region2: #{tpu_custom_call.1} parent=1 // pred_check
      _
    $region3: #{tpu_custom_call.1} parent=1 // pred_check_branch
      %13 = sbr.rel (0) target = $region5
    $region4: #{tpu_custom_call.1} parent=1 // pred_region
      %s15 = ssub.s32 2048, 2048
      %16 = vsyncadd [#allocation3], %s15
      %s17 = sshll.u32 [#allocation2], 4
      %s18 = int_to_ptr.vmem [resolvable:$true] %s17
      %23 = dma.hbm_to_vmem [thread:$0]  %s0, 2048, %s18, [#allocation3], 256, 256, 16
    $region5: #{tpu_custom_call.1} parent=1 // pred_fallthru
      _
    // Predicated region
    $region6: #{tpu_custom_call.1} parent=1 // pred_check
      _
    $region7: #{tpu_custom_call.1} parent=1 // pred_check_branch
      %25 = sbr.rel (0) target = $region9
    $region8: #{tpu_custom_call.1} parent=1 // pred_region
      %s27 = ssub.s32 2048, 2048
      %28 = vsyncadd [#allocation6], %s27
      %s29 = sshll.u32 [#allocation5], 4
      %s30 = int_to_ptr.vmem [resolvable:$true] %s29
      %35 = dma.hbm_to_vmem [thread:$0]  %s1, 2048, %s30, [#allocation6], 256, 256, 16
    $region9: #{tpu_custom_call.1} parent=1 // pred_fallthru
      _
    // Predicated region
    $region10: #{tpu_custom_call.1} parent=1 // pred_check
      _
    $region11: #{tpu_custom_call.1} parent=1 // pred_check_branch
      %37 = sbr.rel (0) target = $region13
    $region12: #{tpu_custom_call.1} parent=1 // pred_region
      %s39 = ssub.s32 8192, 8192
      %40 = vsyncadd [#allocation6], %s39
      %s41 = sshll.u32 [#allocation7], 4
      %s42 = int_to_ptr.vmem [resolvable:$true] %s41
      %47 = dma.hbm_to_vmem [thread:$0]  %s2, 8192, %s42, [#allocation6], 128, 128, 8
    $region13: #{tpu_custom_call.1} parent=1 // pred_fallthru
      _
    // Predicated region
    $region14: #{tpu_custom_call.1} parent=1 // pred_check
      _
    $region15: #{tpu_custom_call.1} parent=1 // pred_check_branch
      %49 = sbr.rel (0) target = $region17
    $region16: #{tpu_custom_call.1} parent=1 // pred_region
      _
    $region17: #{tpu_custom_call.1} parent=1 // pred_fallthru
      _
    // Predicated region
    $region18: #{tpu_custom_call.1} parent=1 // pred_check
      _
    $region19: #{tpu_custom_call.1} parent=1 // pred_check_branch
      %51 = sbr.rel (0) target = $region21
    $region20: #{tpu_custom_call.1} parent=1 // pred_region
      %52 = dma.done [#allocation3], 2048
    $region21: #{tpu_custom_call.1} parent=1 // pred_fallthru
      _
    // Predicated region
    $region22: #{tpu_custom_call.1} parent=1 // pred_check
      _
    $region23: #{tpu_custom_call.1} parent=1 // pred_check_branch
      %54 = sbr.rel (0) target = $region25
    $region24: #{tpu_custom_call.1} parent=1 // pred_region
      %55 = dma.done [#allocation6], 2048
    $region25: #{tpu_custom_call.1} parent=1 // pred_fallthru
      _
    // Predicated region
    $region26: #{tpu_custom_call.1} parent=1 // pred_check
      _
    $region27: #{tpu_custom_call.1} parent=1 // pred_check_branch
      %57 = sbr.rel (0) target = $region29
    $region28: #{tpu_custom_call.1} parent=1 // pred_region
      %58 = dma.done [#allocation6], 8192
    $region29: #{tpu_custom_call.1} parent=1 // pred_fallthru
      _
    %v59 = vld [vmem:[#allocation5] sm:$0xff]
    %v60 = vld [vmem:[#allocation5 + $0x8] sm:$0xff]
    %v61 = vld [vmem:[#allocation5 + $0x10] sm:$0xff]
    %v62 = vld [vmem:[#allocation5 + $0x18] sm:$0xff]
    %v63 = vld [vmem:[#allocation5 + $0x20] sm:$0xff]
    %v64 = vld [vmem:[#allocation5 + $0x28] sm:$0xff]
    %v65 = vld [vmem:[#allocation5 + $0x30] sm:$0xff]
    %v66 = vld [vmem:[#allocation5 + $0x38] sm:$0xff]
    %v67 = vld [vmem:[#allocation5 + $0x40] sm:$0xff]
    %v68 = vld [vmem:[#allocation5 + $0x48] sm:$0xff]
    %v69 = vld [vmem:[#allocation5 + $0x50] sm:$0xff]
    %v70 = vld [vmem:[#allocation5 + $0x58] sm:$0xff]
    %v71 = vld [vmem:[#allocation5 + $0x60] sm:$0xff]
    %v72 = vld [vmem:[#allocation5 + $0x68] sm:$0xff]
    %v73 = vld [vmem:[#allocation5 + $0x70] sm:$0xff]
    %v74 = vld [vmem:[#allocation5 + $0x78] sm:$0xff]
    %v75 = vld [vmem:[#allocation2] sm:$0xff]
    %v76 = vld [vmem:[#allocation2 + $0x8] sm:$0xff]
    %vm77 = vcmask 523264
    %v79 = vsel %vm77, 0.0, 0
    %81 = vmatprep.subr.mxu0 %v60
    %82 = vmatpush1.msra.mxu0 %v59
    %83 = vmatprep.subr.mxu0 %v62
    %84 = vmatpush1.msra.mxu0 %v61
    %85 = vmatprep.subr.mxu0 %v64
    %86 = vmatpush1.msra.mxu0 %v63
    %87 = vmatprep.subr.mxu0 %v66
    %88 = vmatpush1.msra.mxu0 %v65
    %89 = vmatprep.subr.mxu0 %v68
    %90 = vmatpush1.msra.mxu0 %v67
    %91 = vmatprep.subr.mxu0 %v70
    %92 = vmatpush1.msra.mxu0 %v69
    %93 = vmatprep.subr.mxu0 %v72
    %94 = vmatpush1.msra.mxu0 %v71
    %95 = vmatprep.subr.mxu0 %v74
    %96 = vmatpush1.msra.mxu0 %v73
    %97 = vmatprep.subr.mxu0 0.0
    %98 = vmatpush1.msra.mxu0 0.0
    %99 = vmatprep.subr.mxu0 0.0
    %100 = vmatpush1.msra.mxu0 0.0
    %101 = vmatprep.subr.mxu0 0.0
    %102 = vmatpush1.msra.mxu0 0.0
    %103 = vmatprep.subr.mxu0 0.0
    %104 = vmatpush1.msra.mxu0 0.0
    %105 = vmatprep.subr.mxu0 0.0
    %106 = vmatpush1.msra.mxu0 0.0
    %107 = vmatprep.subr.mxu0 0.0
    %108 = vmatpush1.msra.mxu0 0.0
    %109 = vmatprep.subr.mxu0 0.0
    %110 = vmatpush1.msra.mxu0 0.0
    %111 = vmatprep.subr.mxu0 0.0
    %112 = vmatpush1.msra.mxu0 0.0
    %113 = vmatprep.subr.mxu0 0.0
    %114 = vmatpush1.msra.mxu0 0.0
    %115 = vmatprep.subr.mxu0 0.0
    %116 = vmatpush1.msra.mxu0 0.0
    %117 = vmatprep.subr.mxu0 0.0
    %118 = vmatpush1.msra.mxu0 0.0
    %119 = vmatprep.subr.mxu0 0.0
    %120 = vmatpush1.msra.mxu0 0.0
    %121 = vmatprep.subr.mxu0 0.0
    %122 = vmatpush1.msra.mxu0 0.0
    %123 = vmatprep.subr.mxu0 0.0
    %124 = vmatpush1.msra.mxu0 0.0
    %125 = vmatprep.subr.mxu0 0.0
    %126 = vmatpush1.msra.mxu0 0.0
    %127 = vmatprep.subr.mxu0 0.0
    %128 = vmatpush1.msra.mxu0 0.0
    %129 = vmatprep.subr.mxu0 0.0
    %130 = vmatpush1.msra.mxu0 0.0
    %131 = vmatprep.subr.mxu0 0.0
    %132 = vmatpush1.msra.mxu0 0.0
    %133 = vmatprep.subr.mxu0 0.0
    %134 = vmatpush1.msra.mxu0 0.0
    %135 = vmatprep.subr.mxu0 0.0
    %136 = vmatpush1.msra.mxu0 0.0
    %137 = vmatprep.subr.mxu0 0.0
    %138 = vmatpush1.msra.mxu0 0.0
    %139 = vmatprep.subr.mxu0 0.0
    %140 = vmatpush1.msra.mxu0 0.0
    %141 = vmatprep.subr.mxu0 0.0
    %142 = vmatpush1.msra.mxu0 0.0
    %143 = vmatprep.subr.mxu0 0.0
    %144 = vmatpush1.msra.mxu0 0.0
    %145 = vmatprep.mubr.f32.mxu0 0.0
    %146 = vmatmul.mubr.f32.gmra.mrb[0].mxu0 %v79
    %v147 = vpop.f32.mrb[0].mxu0
    %v148 = vadd.f32 0.0, %v147
    %v149 = vpop.f32.mrb[0].mxu0
    %v150 = vadd.f32 0.0, %v149
    %151 = vdwg.mxu0
    %v152 = vadd.f32 %v75, %v148
    %v153 = vadd.f32 %v76, %v150
    %v154 = vxor.u32 %v152, 2147483648
    %v155 = vmul.f32 %v154, 1.442695
    %v156 = vpow.pop %v155
    %v157 = vadd.f32 %v156, 1.0
    %v158 = vrcp.pop %v157
    %v159 = vmul.f32 1.0, %v158
    %v160 = vtanh.pop %v153
    %v161 = vxor.u32 %v153, 2147483648
    %v162 = vmul.f32 %v161, 1.442695
    %v163 = vpow.pop %v162
    %v164 = vadd.f32 %v163, 1.0
    %v165 = vrcp.pop %v164
    %v166 = vmul.f32 1.0, %v165
    %v167 = vmul.f32 %v159, 0.0
    %v168 = vmul.f32 %v159, %v160
    %170 = vrot.lane.b32.xlu0 %v168, 64
    %v171 = vpop.permute.xlu0 %170
    %v173 = vadd.f32 %v167, %v171
    %v174 = vtanh.pop %v173
    %v175 = vmul.f32 %v166, %v174
    %v176 = vld [vmem:[#allocation7] sm:$0xff]
    %v177 = vld [vmem:[#allocation7 + $0x8] sm:$0xff]
    %v178 = vld [vmem:[#allocation7 + $0x10] sm:$0xff]
    %v179 = vld [vmem:[#allocation7 + $0x18] sm:$0xff]
    %v180 = vld [vmem:[#allocation7 + $0x20] sm:$0xff]
    %v181 = vld [vmem:[#allocation7 + $0x28] sm:$0xff]
    %v182 = vld [vmem:[#allocation7 + $0x30] sm:$0xff]
    %v183 = vld [vmem:[#allocation7 + $0x38] sm:$0xff]
    %s184 = scalar_lea.vmem [#allocation2], 16
    %v185 = vld [vmem:[%s184] sm:$0xff]
    %v186 = vld [vmem:[%s184 + $0x8] sm:$0xff]
    %188 = vrot.lane.b32.xlu0 %v175, 64
    %v189 = vpop.permute.xlu0 %188
    %v190 = vsel %vm77, %v189, 0
    %192 = vmatprep.subr.mxu0 %v60
    %193 = vmatpush1.msra.mxu0 %v59
    %194 = vmatprep.subr.mxu0 %v62
    %195 = vmatpush1.msra.mxu0 %v61
    %196 = vmatprep.subr.mxu0 %v64
    %197 = vmatpush1.msra.mxu0 %v63
    %198 = vmatprep.subr.mxu0 %v66
    %199 = vmatpush1.msra.mxu0 %v65
    %200 = vmatprep.subr.mxu0 %v68
    %201 = vmatpush1.msra.mxu0 %v67
    %202 = vmatprep.subr.mxu0 %v70
    %203 = vmatpush1.msra.mxu0 %v69
    %204 = vmatprep.subr.mxu0 %v72
    %205 = vmatpush1.msra.mxu0 %v71
    %206 = vmatprep.subr.mxu0 %v74
    %207 = vmatpush1.msra.mxu0 %v73
    %208 = vmatprep.subr.mxu0 0.0
    %209 = vmatpush1.msra.mxu0 0.0
    %210 = vmatprep.subr.mxu0 0.0
    %211 = vmatpush1.msra.mxu0 0.0
    %212 = vmatprep.subr.mxu0 0.0
    %213 = vmatpush1.msra.mxu0 0.0
    %214 = vmatprep.subr.mxu0 0.0
    %215 = vmatpush1.msra.mxu0 0.0
    %216 = vmatprep.subr.mxu0 0.0
    %217 = vmatpush1.msra.mxu0 0.0
    %218 = vmatprep.subr.mxu0 0.0
    %219 = vmatpush1.msra.mxu0 0.0
    %220 = vmatprep.subr.mxu0 0.0
    %221 = vmatpush1.msra.mxu0 0.0
    %222 = vmatprep.subr.mxu0 0.0
    %223 = vmatpush1.msra.mxu0 0.0
    %224 = vmatprep.subr.mxu0 0.0
    %225 = vmatpush1.msra.mxu0 0.0
    %226 = vmatprep.subr.mxu0 0.0
    %227 = vmatpush1.msra.mxu0 0.0
    %228 = vmatprep.subr.mxu0 0.0
    %229 = vmatpush1.msra.mxu0 0.0
    %230 = vmatprep.subr.mxu0 0.0
    %231 = vmatpush1.msra.mxu0 0.0
    %232 = vmatprep.subr.mxu0 0.0
    %233 = vmatpush1.msra.mxu0 0.0
    %234 = vmatprep.subr.mxu0 0.0
    %235 = vmatpush1.msra.mxu0 0.0
    %236 = vmatprep.subr.mxu0 0.0
    %237 = vmatpush1.msra.mxu0 0.0
    %238 = vmatprep.subr.mxu0 0.0
    %239 = vmatpush1.msra.mxu0 0.0
    %240 = vmatprep.subr.mxu0 0.0
    %241 = vmatpush1.msra.mxu0 0.0
    %242 = vmatprep.subr.mxu0 0.0
    %243 = vmatpush1.msra.mxu0 0.0
    %244 = vmatprep.subr.mxu0 0.0
    %245 = vmatpush1.msra.mxu0 0.0
    %246 = vmatprep.subr.mxu0 0.0
    %247 = vmatpush1.msra.mxu0 0.0
    %248 = vmatprep.subr.mxu0 0.0
    %249 = vmatpush1.msra.mxu0 0.0
    %250 = vmatprep.subr.mxu0 0.0
    %251 = vmatpush1.msra.mxu0 0.0
    %252 = vmatprep.subr.mxu0 0.0
    %253 = vmatpush1.msra.mxu0 0.0
    %254 = vmatprep.subr.mxu0 0.0
    %255 = vmatpush1.msra.mxu0 0.0
    %256 = vmatprep.mubr.f32.mxu0 0.0
    %257 = vmatmul.mubr.f32.gmra.mrb[0].mxu0 %v190
    %v258 = vpop.f32.mrb[0].mxu0
    %v259 = vadd.f32 0.0, %v258
    %v260 = vpop.f32.mrb[0].mxu0
    %v261 = vadd.f32 0.0, %v260
    %262 = vdwg.mxu0
    %v263 = vadd.f32 %v185, %v259
    %v264 = vadd.f32 %v186, %v261
    %v265 = vxor.u32 %v263, 2147483648
    %v266 = vmul.f32 %v265, 1.442695
    %v267 = vpow.pop %v266
    %v268 = vadd.f32 %v267, 1.0
    %v269 = vrcp.pop %v268
    %v270 = vmul.f32 1.0, %v269
    %v271 = vtanh.pop %v264
    %v272 = vxor.u32 %v264, 2147483648
    %v273 = vmul.f32 %v272, 1.442695
    %v274 = vpow.pop %v273
    %v275 = vadd.f32 %v274, 1.0
    %v276 = vrcp.pop %v275
    %v277 = vmul.f32 1.0, %v276
    %v278 = vmul.f32 %v270, %v173
    %v279 = vmul.f32 %v270, %v271
    %281 = vrot.lane.b32.xlu0 %v279, 64
    %v282 = vpop.permute.xlu0 %281
    %v284 = vadd.f32 %v278, %v282
    %v285 = vtanh.pop %v284
    %v286 = vmul.f32 %v277, %v285
    %s287 = scalar_lea.vmem [#allocation7], 64
    %v288 = vld [vmem:[%s287] sm:$0xff]
    %v289 = vld [vmem:[%s287 + $0x8] sm:$0xff]
    %v290 = vld [vmem:[%s287 + $0x10] sm:$0xff]
    %v291 = vld [vmem:[%s287 + $0x18] sm:$0xff]
    %v292 = vld [vmem:[%s287 + $0x20] sm:$0xff]
    %v293 = vld [vmem:[%s287 + $0x28] sm:$0xff]
    %v294 = vld [vmem:[%s287 + $0x30] sm:$0xff]
    %v295 = vld [vmem:[%s287 + $0x38] sm:$0xff]
    %297 = vrot.lane.b32.xlu0 %v286, 64
    %v298 = vpop.permute.xlu0 %297
    %v299 = vsel %vm77, %v298, 0
    %301 = vmatprep.subr.mxu0 0.0
    %302 = vmatpush1.msra.mxu0 %v288
    %303 = vmatprep.subr.mxu0 0.0
    %304 = vmatpush1.msra.mxu0 %v289
    %305 = vmatprep.subr.mxu0 0.0
    %306 = vmatpush1.msra.mxu0 %v290
    %307 = vmatprep.subr.mxu0 0.0
    %308 = vmatpush1.msra.mxu0 %v291
    %309 = vmatprep.subr.mxu0 0.0
    %310 = vmatpush1.msra.mxu0 %v292
    %311 = vmatprep.subr.mxu0 0.0
    %312 = vmatpush1.msra.mxu0 %v293
    %313 = vmatprep.subr.mxu0 0.0
    %314 = vmatpush1.msra.mxu0 %v294
    %315 = vmatprep.subr.mxu0 0.0
    %316 = vmatpush1.msra.mxu0 %v295
    %317 = vmatprep.subr.mxu0 0.0
    %318 = vmatpush1.msra.mxu0 0.0
    %319 = vmatprep.subr.mxu0 0.0
    %320 = vmatpush1.msra.mxu0 0.0
    %321 = vmatprep.subr.mxu0 0.0
    %322 = vmatpush1.msra.mxu0 0.0
    %323 = vmatprep.subr.mxu0 0.0
    %324 = vmatpush1.msra.mxu0 0.0
    %325 = vmatprep.subr.mxu0 0.0
    %326 = vmatpush1.msra.mxu0 0.0
    %327 = vmatprep.subr.mxu0 0.0
    %328 = vmatpush1.msra.mxu0 0.0
    %329 = vmatprep.subr.mxu0 0.0
    %330 = vmatpush1.msra.mxu0 0.0
    %331 = vmatprep.subr.mxu0 0.0
    %332 = vmatpush1.msra.mxu0 0.0
    %333 = vmatprep.subr.mxu0 0.0
    %334 = vmatpush1.msra.mxu0 0.0
    %335 = vmatprep.subr.mxu0 0.0
    %336 = vmatpush1.msra.mxu0 0.0
    %337 = vmatprep.subr.mxu0 0.0
    %338 = vmatpush1.msra.mxu0 0.0
    %339 = vmatprep.subr.mxu0 0.0
    %340 = vmatpush1.msra.mxu0 0.0
    %341 = vmatprep.subr.mxu0 0.0
    %342 = vmatpush1.msra.mxu0 0.0
    %343 = vmatprep.subr.mxu0 0.0
    %344 = vmatpush1.msra.mxu0 0.0
    %345 = vmatprep.subr.mxu0 0.0
    %346 = vmatpush1.msra.mxu0 0.0
    %347 = vmatprep.subr.mxu0 0.0
    %348 = vmatpush1.msra.mxu0 0.0
    %349 = vmatprep.subr.mxu0 0.0
    %350 = vmatpush1.msra.mxu0 0.0
    %351 = vmatprep.subr.mxu0 0.0
    %352 = vmatpush1.msra.mxu0 0.0
    %353 = vmatprep.subr.mxu0 0.0
    %354 = vmatpush1.msra.mxu0 0.0
    %355 = vmatprep.subr.mxu0 0.0
    %356 = vmatpush1.msra.mxu0 0.0
    %357 = vmatprep.subr.mxu0 0.0
    %358 = vmatpush1.msra.mxu0 0.0
    %359 = vmatprep.subr.mxu0 0.0
    %360 = vmatpush1.msra.mxu0 0.0
    %361 = vmatprep.subr.mxu0 0.0
    %362 = vmatpush1.msra.mxu0 0.0
    %363 = vmatprep.subr.mxu0 0.0
    %364 = vmatpush1.msra.mxu0 0.0
    %365 = vmatprep.mubr.f32.mxu0 0.0
    %366 = vmatmul.mubr.f32.gmra.mrb[0].mxu0 %v299
    %v367 = vpop.f32.mrb[0].mxu0
    %v368 = vadd.f32 0.0, %v367
    %v369 = vpop.f32.mrb[0].mxu0
    %370 = vdwg.mxu0
    %371 = vmatprep.subr.mxu0 0.0
    %372 = vmatpush1.msra.mxu0 %v176
    %373 = vmatprep.subr.mxu0 0.0
    %374 = vmatpush1.msra.mxu0 %v177
    %375 = vmatprep.subr.mxu0 0.0
    %376 = vmatpush1.msra.mxu0 %v178
    %377 = vmatprep.subr.mxu0 0.0
    %378 = vmatpush1.msra.mxu0 %v179
    %379 = vmatprep.subr.mxu0 0.0
    %380 = vmatpush1.msra.mxu0 %v180
    %381 = vmatprep.subr.mxu0 0.0
    %382 = vmatpush1.msra.mxu0 %v181
    %383 = vmatprep.subr.mxu0 0.0
    %384 = vmatpush1.msra.mxu0 %v182
    %385 = vmatprep.subr.mxu0 0.0
    %386 = vmatpush1.msra.mxu0 %v183
    %387 = vmatprep.subr.mxu0 0.0
    %388 = vmatpush1.msra.mxu0 0.0
    %389 = vmatprep.subr.mxu0 0.0
    %390 = vmatpush1.msra.mxu0 0.0
    %391 = vmatprep.subr.mxu0 0.0
    %392 = vmatpush1.msra.mxu0 0.0
    %393 = vmatprep.subr.mxu0 0.0
    %394 = vmatpush1.msra.mxu0 0.0
    %395 = vmatprep.subr.mxu0 0.0
    %396 = vmatpush1.msra.mxu0 0.0
    %397 = vmatprep.subr.mxu0 0.0
    %398 = vmatpush1.msra.mxu0 0.0
    %399 = vmatprep.subr.mxu0 0.0
    %400 = vmatpush1.msra.mxu0 0.0
    %401 = vmatprep.subr.mxu0 0.0
    %402 = vmatpush1.msra.mxu0 0.0
    %403 = vmatprep.subr.mxu0 0.0
    %404 = vmatpush1.msra.mxu0 0.0
    %405 = vmatprep.subr.mxu0 0.0
    %406 = vmatpush1.msra.mxu0 0.0
    %407 = vmatprep.subr.mxu0 0.0
    %408 = vmatpush1.msra.mxu0 0.0
    %409 = vmatprep.subr.mxu0 0.0
    %410 = vmatpush1.msra.mxu0 0.0
    %411 = vmatprep.subr.mxu0 0.0
    %412 = vmatpush1.msra.mxu0 0.0
    %413 = vmatprep.subr.mxu0 0.0
    %414 = vmatpush1.msra.mxu0 0.0
    %415 = vmatprep.subr.mxu0 0.0
    %416 = vmatpush1.msra.mxu0 0.0
    %417 = vmatprep.subr.mxu0 0.0
    %418 = vmatpush1.msra.mxu0 0.0
    %419 = vmatprep.subr.mxu0 0.0
    %420 = vmatpush1.msra.mxu0 0.0
    %421 = vmatprep.subr.mxu0 0.0
    %422 = vmatpush1.msra.mxu0 0.0
    %423 = vmatprep.subr.mxu0 0.0
    %424 = vmatpush1.msra.mxu0 0.0
    %425 = vmatprep.subr.mxu0 0.0
    %426 = vmatpush1.msra.mxu0 0.0
    %427 = vmatprep.subr.mxu0 0.0
    %428 = vmatpush1.msra.mxu0 0.0
    %429 = vmatprep.subr.mxu0 0.0
    %430 = vmatpush1.msra.mxu0 0.0
    %431 = vmatprep.subr.mxu0 0.0
    %432 = vmatpush1.msra.mxu0 0.0
    %433 = vmatprep.subr.mxu0 0.0
    %434 = vmatpush1.msra.mxu0 0.0
    %435 = vmatprep.mubr.f32.mxu0 0.0
    %436 = vmatmul.mubr.f32.gmra.mrb[0].mxu0 %v190
    %v437 = vpop.f32.mrb[0].mxu0
    %v438 = vadd.f32 %v368, %v437
    %v439 = vpop.f32.mrb[0].mxu0
    %440 = vdwg.mxu0
    %s441 = scalar_lea.vmem [#allocation2], 32
    %v442 = vld [vmem:[%s441] sm:$0xff]
    %v443 = vld [vmem:[%s441 + $0x8] sm:$0xff]
    %444 = vmatprep.subr.mxu0 %v60
    %445 = vmatpush1.msra.mxu0 %v59
    %446 = vmatprep.subr.mxu0 %v62
    %447 = vmatpush1.msra.mxu0 %v61
    %448 = vmatprep.subr.mxu0 %v64
    %449 = vmatpush1.msra.mxu0 %v63
    %450 = vmatprep.subr.mxu0 %v66
    %451 = vmatpush1.msra.mxu0 %v65
    %452 = vmatprep.subr.mxu0 %v68
    %453 = vmatpush1.msra.mxu0 %v67
    %454 = vmatprep.subr.mxu0 %v70
    %455 = vmatpush1.msra.mxu0 %v69
    %456 = vmatprep.subr.mxu0 %v72
    %457 = vmatpush1.msra.mxu0 %v71
    %458 = vmatprep.subr.mxu0 %v74
    %459 = vmatpush1.msra.mxu0 %v73
    %460 = vmatprep.subr.mxu0 0.0
    %461 = vmatpush1.msra.mxu0 0.0
    %462 = vmatprep.subr.mxu0 0.0
    %463 = vmatpush1.msra.mxu0 0.0
    %464 = vmatprep.subr.mxu0 0.0
    %465 = vmatpush1.msra.mxu0 0.0
    %466 = vmatprep.subr.mxu0 0.0
    %467 = vmatpush1.msra.mxu0 0.0
    %468 = vmatprep.subr.mxu0 0.0
    %469 = vmatpush1.msra.mxu0 0.0
    %470 = vmatprep.subr.mxu0 0.0
    %471 = vmatpush1.msra.mxu0 0.0
    %472 = vmatprep.subr.mxu0 0.0
    %473 = vmatpush1.msra.mxu0 0.0
    %474 = vmatprep.subr.mxu0 0.0
    %475 = vmatpush1.msra.mxu0 0.0
    %476 = vmatprep.subr.mxu0 0.0
    %477 = vmatpush1.msra.mxu0 0.0
    %478 = vmatprep.subr.mxu0 0.0
    %479 = vmatpush1.msra.mxu0 0.0
    %480 = vmatprep.subr.mxu0 0.0
    %481 = vmatpush1.msra.mxu0 0.0
    %482 = vmatprep.subr.mxu0 0.0
    %483 = vmatpush1.msra.mxu0 0.0
    %484 = vmatprep.subr.mxu0 0.0
    %485 = vmatpush1.msra.mxu0 0.0
    %486 = vmatprep.subr.mxu0 0.0
    %487 = vmatpush1.msra.mxu0 0.0
    %488 = vmatprep.subr.mxu0 0.0
    %489 = vmatpush1.msra.mxu0 0.0
    %490 = vmatprep.subr.mxu0 0.0
    %491 = vmatpush1.msra.mxu0 0.0
    %492 = vmatprep.subr.mxu0 0.0
    %493 = vmatpush1.msra.mxu0 0.0
    %494 = vmatprep.subr.mxu0 0.0
    %495 = vmatpush1.msra.mxu0 0.0
    %496 = vmatprep.subr.mxu0 0.0
    %497 = vmatpush1.msra.mxu0 0.0
    %498 = vmatprep.subr.mxu0 0.0
    %499 = vmatpush1.msra.mxu0 0.0
    %500 = vmatprep.subr.mxu0 0.0
    %501 = vmatpush1.msra.mxu0 0.0
    %502 = vmatprep.subr.mxu0 0.0
    %503 = vmatpush1.msra.mxu0 0.0
    %504 = vmatprep.subr.mxu0 0.0
    %505 = vmatpush1.msra.mxu0 0.0
    %506 = vmatprep.subr.mxu0 0.0
    %507 = vmatpush1.msra.mxu0 0.0
    %508 = vmatprep.mubr.f32.mxu0 0.0
    %509 = vmatmul.mubr.f32.gmra.mrb[0].mxu0 %v299
    %v510 = vpop.f32.mrb[0].mxu0
    %v511 = vadd.f32 0.0, %v510
    %v512 = vpop.f32.mrb[0].mxu0
    %v513 = vadd.f32 0.0, %v512
    %514 = vdwg.mxu0
    %v515 = vadd.f32 %v442, %v511
    %v516 = vadd.f32 %v443, %v513
    %v517 = vxor.u32 %v515, 2147483648
    %v518 = vmul.f32 %v517, 1.442695
    %v519 = vpow.pop %v518
    %v520 = vadd.f32 %v519, 1.0
    %v521 = vrcp.pop %v520
    %v522 = vmul.f32 1.0, %v521
    %v523 = vtanh.pop %v516
    %v524 = vxor.u32 %v516, 2147483648
    %v525 = vmul.f32 %v524, 1.442695
    %v526 = vpow.pop %v525
    %v527 = vadd.f32 %v526, 1.0
    %v528 = vrcp.pop %v527
    %v529 = vmul.f32 1.0, %v528
    %v530 = vmul.f32 %v522, %v284
    %v531 = vmul.f32 %v522, %v523
    %533 = vrot.lane.b32.xlu0 %v531, 64
    %v534 = vpop.permute.xlu0 %533
    %v536 = vadd.f32 %v530, %v534
    %v537 = vtanh.pop %v536
    %v538 = vmul.f32 %v529, %v537
    %s539 = scalar_lea.vmem [#allocation7], 128
    %v540 = vld [vmem:[%s539] sm:$0xff]
    %v541 = vld [vmem:[%s539 + $0x8] sm:$0xff]
    %v542 = vld [vmem:[%s539 + $0x10] sm:$0xff]
    %v543 = vld [vmem:[%s539 + $0x18] sm:$0xff]
    %v544 = vld [vmem:[%s539 + $0x20] sm:$0xff]
    %v545 = vld [vmem:[%s539 + $0x28] sm:$0xff]
    %v546 = vld [vmem:[%s539 + $0x30] sm:$0xff]
    %v547 = vld [vmem:[%s539 + $0x38] sm:$0xff]
    %549 = vrot.lane.b32.xlu0 %v538, 64
    %v550 = vpop.permute.xlu0 %549
    %v551 = vsel %vm77, %v550, 0
    %553 = vmatprep.subr.mxu0 0.0
    %554 = vmatpush1.msra.mxu0 %v540
    %555 = vmatprep.subr.mxu0 0.0
    %556 = vmatpush1.msra.mxu0 %v541
    %557 = vmatprep.subr.mxu0 0.0
    %558 = vmatpush1.msra.mxu0 %v542
    %559 = vmatprep.subr.mxu0 0.0
    %560 = vmatpush1.msra.mxu0 %v543
    %561 = vmatprep.subr.mxu0 0.0
    %562 = vmatpush1.msra.mxu0 %v544
    %563 = vmatprep.subr.mxu0 0.0
    %564 = vmatpush1.msra.mxu0 %v545
    %565 = vmatprep.subr.mxu0 0.0
    %566 = vmatpush1.msra.mxu0 %v546
    %567 = vmatprep.subr.mxu0 0.0
    %568 = vmatpush1.msra.mxu0 %v547
    %569 = vmatprep.subr.mxu0 0.0
    %570 = vmatpush1.msra.mxu0 0.0
    %571 = vmatprep.subr.mxu0 0.0
    %572 = vmatpush1.msra.mxu0 0.0
    %573 = vmatprep.subr.mxu0 0.0
    %574 = vmatpush1.msra.mxu0 0.0
    %575 = vmatprep.subr.mxu0 0.0
    %576 = vmatpush1.msra.mxu0 0.0
    %577 = vmatprep.subr.mxu0 0.0
    %578 = vmatpush1.msra.mxu0 0.0
    %579 = vmatprep.subr.mxu0 0.0
    %580 = vmatpush1.msra.mxu0 0.0
    %581 = vmatprep.subr.mxu0 0.0
    %582 = vmatpush1.msra.mxu0 0.0
    %583 = vmatprep.subr.mxu0 0.0
    %584 = vmatpush1.msra.mxu0 0.0
    %585 = vmatprep.subr.mxu0 0.0
    %586 = vmatpush1.msra.mxu0 0.0
    %587 = vmatprep.subr.mxu0 0.0
    %588 = vmatpush1.msra.mxu0 0.0
    %589 = vmatprep.subr.mxu0 0.0
    %590 = vmatpush1.msra.mxu0 0.0
    %591 = vmatprep.subr.mxu0 0.0
    %592 = vmatpush1.msra.mxu0 0.0
    %593 = vmatprep.subr.mxu0 0.0
    %594 = vmatpush1.msra.mxu0 0.0
    %595 = vmatprep.subr.mxu0 0.0
    %596 = vmatpush1.msra.mxu0 0.0
    %597 = vmatprep.subr.mxu0 0.0
    %598 = vmatpush1.msra.mxu0 0.0
    %599 = vmatprep.subr.mxu0 0.0
    %600 = vmatpush1.msra.mxu0 0.0
    %601 = vmatprep.subr.mxu0 0.0
    %602 = vmatpush1.msra.mxu0 0.0
    %603 = vmatprep.subr.mxu0 0.0
    %604 = vmatpush1.msra.mxu0 0.0
    %605 = vmatprep.subr.mxu0 0.0
    %606 = vmatpush1.msra.mxu0 0.0
    %607 = vmatprep.subr.mxu0 0.0
    %608 = vmatpush1.msra.mxu0 0.0
    %609 = vmatprep.subr.mxu0 0.0
    %610 = vmatpush1.msra.mxu0 0.0
    %611 = vmatprep.subr.mxu0 0.0
    %612 = vmatpush1.msra.mxu0 0.0
    %613 = vmatprep.subr.mxu0 0.0
    %614 = vmatpush1.msra.mxu0 0.0
    %615 = vmatprep.subr.mxu0 0.0
    %616 = vmatpush1.msra.mxu0 0.0
    %617 = vmatprep.mubr.f32.mxu0 0.0
    %618 = vmatmul.mubr.f32.gmra.mrb[0].mxu0 %v551
    %v619 = vpop.f32.mrb[0].mxu0
    %v620 = vadd.f32 0.0, %v619
    %v621 = vpop.f32.mrb[0].mxu0
    %622 = vdwg.mxu0
    %v623 = vadd.f32 %v438, %v620
    %s624 = scalar_lea.vmem [#allocation2], 48
    %v625 = vld [vmem:[%s624] sm:$0xff]
    %v626 = vld [vmem:[%s624 + $0x8] sm:$0xff]
    %627 = vmatprep.subr.mxu0 %v60
    %628 = vmatpush1.msra.mxu0 %v59
    %629 = vmatprep.subr.mxu0 %v62
    %630 = vmatpush1.msra.mxu0 %v61
    %631 = vmatprep.subr.mxu0 %v64
    %632 = vmatpush1.msra.mxu0 %v63
    %633 = vmatprep.subr.mxu0 %v66
    %634 = vmatpush1.msra.mxu0 %v65
    %635 = vmatprep.subr.mxu0 %v68
    %636 = vmatpush1.msra.mxu0 %v67
    %637 = vmatprep.subr.mxu0 %v70
    %638 = vmatpush1.msra.mxu0 %v69
    %639 = vmatprep.subr.mxu0 %v72
    %640 = vmatpush1.msra.mxu0 %v71
    %641 = vmatprep.subr.mxu0 %v74
    %642 = vmatpush1.msra.mxu0 %v73
    %643 = vmatprep.subr.mxu0 0.0
    %644 = vmatpush1.msra.mxu0 0.0
    %645 = vmatprep.subr.mxu0 0.0
    %646 = vmatpush1.msra.mxu0 0.0
    %647 = vmatprep.subr.mxu0 0.0
    %648 = vmatpush1.msra.mxu0 0.0
    %649 = vmatprep.subr.mxu0 0.0
    %650 = vmatpush1.msra.mxu0 0.0
    %651 = vmatprep.subr.mxu0 0.0
    %652 = vmatpush1.msra.mxu0 0.0
    %653 = vmatprep.subr.mxu0 0.0
    %654 = vmatpush1.msra.mxu0 0.0
    %655 = vmatprep.subr.mxu0 0.0
    %656 = vmatpush1.msra.mxu0 0.0
    %657 = vmatprep.subr.mxu0 0.0
    %658 = vmatpush1.msra.mxu0 0.0
    %659 = vmatprep.subr.mxu0 0.0
    %660 = vmatpush1.msra.mxu0 0.0
    %661 = vmatprep.subr.mxu0 0.0
    %662 = vmatpush1.msra.mxu0 0.0
    %663 = vmatprep.subr.mxu0 0.0
    %664 = vmatpush1.msra.mxu0 0.0
    %665 = vmatprep.subr.mxu0 0.0
    %666 = vmatpush1.msra.mxu0 0.0
    %667 = vmatprep.subr.mxu0 0.0
    %668 = vmatpush1.msra.mxu0 0.0
    %669 = vmatprep.subr.mxu0 0.0
    %670 = vmatpush1.msra.mxu0 0.0
    %671 = vmatprep.subr.mxu0 0.0
    %672 = vmatpush1.msra.mxu0 0.0
    %673 = vmatprep.subr.mxu0 0.0
    %674 = vmatpush1.msra.mxu0 0.0
    %675 = vmatprep.subr.mxu0 0.0
    %676 = vmatpush1.msra.mxu0 0.0
    %677 = vmatprep.subr.mxu0 0.0
    %678 = vmatpush1.msra.mxu0 0.0
    %679 = vmatprep.subr.mxu0 0.0
    %680 = vmatpush1.msra.mxu0 0.0
    %681 = vmatprep.subr.mxu0 0.0
    %682 = vmatpush1.msra.mxu0 0.0
    %683 = vmatprep.subr.mxu0 0.0
    %684 = vmatpush1.msra.mxu0 0.0
    %685 = vmatprep.subr.mxu0 0.0
    %686 = vmatpush1.msra.mxu0 0.0
    %687 = vmatprep.subr.mxu0 0.0
    %688 = vmatpush1.msra.mxu0 0.0
    %689 = vmatprep.subr.mxu0 0.0
    %690 = vmatpush1.msra.mxu0 0.0
    %691 = vmatprep.mubr.f32.mxu0 0.0
    %692 = vmatmul.mubr.f32.gmra.mrb[0].mxu0 %v551
    %v693 = vpop.f32.mrb[0].mxu0
    %v694 = vadd.f32 0.0, %v693
    %v695 = vpop.f32.mrb[0].mxu0
    %v696 = vadd.f32 0.0, %v695
    %697 = vdwg.mxu0
    %v698 = vadd.f32 %v625, %v694
    %v699 = vadd.f32 %v626, %v696
    %v700 = vxor.u32 %v698, 2147483648
    %v701 = vmul.f32 %v700, 1.442695
    %v702 = vpow.pop %v701
    %v703 = vadd.f32 %v702, 1.0
    %v704 = vrcp.pop %v703
    %v705 = vmul.f32 1.0, %v704
    %v706 = vtanh.pop %v699
    %v707 = vxor.u32 %v699, 2147483648
    %v708 = vmul.f32 %v707, 1.442695
    %v709 = vpow.pop %v708
    %v710 = vadd.f32 %v709, 1.0
    %v711 = vrcp.pop %v710
    %v712 = vmul.f32 1.0, %v711
    %v713 = vmul.f32 %v705, %v536
    %v714 = vmul.f32 %v705, %v706
    %716 = vrot.lane.b32.xlu0 %v714, 64
    %v717 = vpop.permute.xlu0 %716
    %v719 = vadd.f32 %v713, %v717
    %v720 = vtanh.pop %v719
    %v721 = vmul.f32 %v712, %v720
    %s722 = scalar_lea.vmem [#allocation7], 192
    %v723 = vld [vmem:[%s722] sm:$0xff]
    %v724 = vld [vmem:[%s722 + $0x8] sm:$0xff]
    %v725 = vld [vmem:[%s722 + $0x10] sm:$0xff]
    %v726 = vld [vmem:[%s722 + $0x18] sm:$0xff]
    %v727 = vld [vmem:[%s722 + $0x20] sm:$0xff]
    %v728 = vld [vmem:[%s722 + $0x28] sm:$0xff]
    %v729 = vld [vmem:[%s722 + $0x30] sm:$0xff]
    %v730 = vld [vmem:[%s722 + $0x38] sm:$0xff]
    %732 = vrot.lane.b32.xlu0 %v721, 64
    %v733 = vpop.permute.xlu0 %732
    %v734 = vsel %vm77, %v733, 0
    %736 = vmatprep.subr.mxu0 0.0
    %737 = vmatpush1.msra.mxu0 %v723
    %738 = vmatprep.subr.mxu0 0.0
    %739 = vmatpush1.msra.mxu0 %v724
    %740 = vmatprep.subr.mxu0 0.0
    %741 = vmatpush1.msra.mxu0 %v725
    %742 = vmatprep.subr.mxu0 0.0
    %743 = vmatpush1.msra.mxu0 %v726
    %744 = vmatprep.subr.mxu0 0.0
    %745 = vmatpush1.msra.mxu0 %v727
    %746 = vmatprep.subr.mxu0 0.0
    %747 = vmatpush1.msra.mxu0 %v728
    %748 = vmatprep.subr.mxu0 0.0
    %749 = vmatpush1.msra.mxu0 %v729
    %750 = vmatprep.subr.mxu0 0.0
    %751 = vmatpush1.msra.mxu0 %v730
    %752 = vmatprep.subr.mxu0 0.0
    %753 = vmatpush1.msra.mxu0 0.0
    %754 = vmatprep.subr.mxu0 0.0
    %755 = vmatpush1.msra.mxu0 0.0
    %756 = vmatprep.subr.mxu0 0.0
    %757 = vmatpush1.msra.mxu0 0.0
    %758 = vmatprep.subr.mxu0 0.0
    %759 = vmatpush1.msra.mxu0 0.0
    %760 = vmatprep.subr.mxu0 0.0
    %761 = vmatpush1.msra.mxu0 0.0
    %762 = vmatprep.subr.mxu0 0.0
    %763 = vmatpush1.msra.mxu0 0.0
    %764 = vmatprep.subr.mxu0 0.0
    %765 = vmatpush1.msra.mxu0 0.0
    %766 = vmatprep.subr.mxu0 0.0
    %767 = vmatpush1.msra.mxu0 0.0
    %768 = vmatprep.subr.mxu0 0.0
    %769 = vmatpush1.msra.mxu0 0.0
    %770 = vmatprep.subr.mxu0 0.0
    %771 = vmatpush1.msra.mxu0 0.0
    %772 = vmatprep.subr.mxu0 0.0
    %773 = vmatpush1.msra.mxu0 0.0
    %774 = vmatprep.subr.mxu0 0.0
    %775 = vmatpush1.msra.mxu0 0.0
    %776 = vmatprep.subr.mxu0 0.0
    %777 = vmatpush1.msra.mxu0 0.0
    %778 = vmatprep.subr.mxu0 0.0
    %779 = vmatpush1.msra.mxu0 0.0
    %780 = vmatprep.subr.mxu0 0.0
    %781 = vmatpush1.msra.mxu0 0.0
    %782 = vmatprep.subr.mxu0 0.0
    %783 = vmatpush1.msra.mxu0 0.0
    %784 = vmatprep.subr.mxu0 0.0
    %785 = vmatpush1.msra.mxu0 0.0
    %786 = vmatprep.subr.mxu0 0.0
    %787 = vmatpush1.msra.mxu0 0.0
    %788 = vmatprep.subr.mxu0 0.0
    %789 = vmatpush1.msra.mxu0 0.0
    %790 = vmatprep.subr.mxu0 0.0
    %791 = vmatpush1.msra.mxu0 0.0
    %792 = vmatprep.subr.mxu0 0.0
    %793 = vmatpush1.msra.mxu0 0.0
    %794 = vmatprep.subr.mxu0 0.0
    %795 = vmatpush1.msra.mxu0 0.0
    %796 = vmatprep.subr.mxu0 0.0
    %797 = vmatpush1.msra.mxu0 0.0
    %798 = vmatprep.subr.mxu0 0.0
    %799 = vmatpush1.msra.mxu0 0.0
    %800 = vmatprep.mubr.f32.mxu0 0.0
    %801 = vmatmul.mubr.f32.gmra.mrb[0].mxu0 %v734
    %v802 = vpop.f32.mrb[0].mxu0
    %v803 = vadd.f32 0.0, %v802
    %v804 = vpop.f32.mrb[0].mxu0
    %805 = vdwg.mxu0
    %v806 = vadd.f32 %v623, %v803
    %s807 = scalar_lea.vmem [#allocation2], 64
    %v808 = vld [vmem:[%s807] sm:$0xff]
    %v809 = vld [vmem:[%s807 + $0x8] sm:$0xff]
    %810 = vmatprep.subr.mxu0 %v60
    %811 = vmatpush1.msra.mxu0 %v59
    %812 = vmatprep.subr.mxu0 %v62
    %813 = vmatpush1.msra.mxu0 %v61
    %814 = vmatprep.subr.mxu0 %v64
    %815 = vmatpush1.msra.mxu0 %v63
    %816 = vmatprep.subr.mxu0 %v66
    %817 = vmatpush1.msra.mxu0 %v65
    %818 = vmatprep.subr.mxu0 %v68
    %819 = vmatpush1.msra.mxu0 %v67
    %820 = vmatprep.subr.mxu0 %v70
    %821 = vmatpush1.msra.mxu0 %v69
    %822 = vmatprep.subr.mxu0 %v72
    %823 = vmatpush1.msra.mxu0 %v71
    %824 = vmatprep.subr.mxu0 %v74
    %825 = vmatpush1.msra.mxu0 %v73
    %826 = vmatprep.subr.mxu0 0.0
    %827 = vmatpush1.msra.mxu0 0.0
    %828 = vmatprep.subr.mxu0 0.0
    %829 = vmatpush1.msra.mxu0 0.0
    %830 = vmatprep.subr.mxu0 0.0
    %831 = vmatpush1.msra.mxu0 0.0
    %832 = vmatprep.subr.mxu0 0.0
    %833 = vmatpush1.msra.mxu0 0.0
    %834 = vmatprep.subr.mxu0 0.0
    %835 = vmatpush1.msra.mxu0 0.0
    %836 = vmatprep.subr.mxu0 0.0
    %837 = vmatpush1.msra.mxu0 0.0
    %838 = vmatprep.subr.mxu0 0.0
    %839 = vmatpush1.msra.mxu0 0.0
    %840 = vmatprep.subr.mxu0 0.0
    %841 = vmatpush1.msra.mxu0 0.0
    %842 = vmatprep.subr.mxu0 0.0
    %843 = vmatpush1.msra.mxu0 0.0
    %844 = vmatprep.subr.mxu0 0.0
    %845 = vmatpush1.msra.mxu0 0.0
    %846 = vmatprep.subr.mxu0 0.0
    %847 = vmatpush1.msra.mxu0 0.0
    %848 = vmatprep.subr.mxu0 0.0
    %849 = vmatpush1.msra.mxu0 0.0
    %850 = vmatprep.subr.mxu0 0.0
    %851 = vmatpush1.msra.mxu0 0.0
    %852 = vmatprep.subr.mxu0 0.0
    %853 = vmatpush1.msra.mxu0 0.0
    %854 = vmatprep.subr.mxu0 0.0
    %855 = vmatpush1.msra.mxu0 0.0
    %856 = vmatprep.subr.mxu0 0.0
    %857 = vmatpush1.msra.mxu0 0.0
    %858 = vmatprep.subr.mxu0 0.0
    %859 = vmatpush1.msra.mxu0 0.0
    %860 = vmatprep.subr.mxu0 0.0
    %861 = vmatpush1.msra.mxu0 0.0
    %862 = vmatprep.subr.mxu0 0.0
    %863 = vmatpush1.msra.mxu0 0.0
    %864 = vmatprep.subr.mxu0 0.0
    %865 = vmatpush1.msra.mxu0 0.0
    %866 = vmatprep.subr.mxu0 0.0
    %867 = vmatpush1.msra.mxu0 0.0
    %868 = vmatprep.subr.mxu0 0.0
    %869 = vmatpush1.msra.mxu0 0.0
    %870 = vmatprep.subr.mxu0 0.0
    %871 = vmatpush1.msra.mxu0 0.0
    %872 = vmatprep.subr.mxu0 0.0
    %873 = vmatpush1.msra.mxu0 0.0
    %874 = vmatprep.mubr.f32.mxu0 0.0
    %875 = vmatmul.mubr.f32.gmra.mrb[0].mxu0 %v734
    %v876 = vpop.f32.mrb[0].mxu0
    %v877 = vadd.f32 0.0, %v876
    %v878 = vpop.f32.mrb[0].mxu0
    %v879 = vadd.f32 0.0, %v878
    %880 = vdwg.mxu0
    %v881 = vadd.f32 %v808, %v877
    %v882 = vadd.f32 %v809, %v879
    %v883 = vxor.u32 %v881, 2147483648
    %v884 = vmul.f32 %v883, 1.442695
    %v885 = vpow.pop %v884
    %v886 = vadd.f32 %v885, 1.0
    %v887 = vrcp.pop %v886
    %v888 = vmul.f32 1.0, %v887
    %v889 = vtanh.pop %v882
    %v890 = vxor.u32 %v882, 2147483648
    %v891 = vmul.f32 %v890, 1.442695
    %v892 = vpow.pop %v891
    %v893 = vadd.f32 %v892, 1.0
    %v894 = vrcp.pop %v893
    %v895 = vmul.f32 1.0, %v894
    %v896 = vmul.f32 %v888, %v719
    %v897 = vmul.f32 %v888, %v889
    %899 = vrot.lane.b32.xlu0 %v897, 64
    %v900 = vpop.permute.xlu0 %899
    %v902 = vadd.f32 %v896, %v900
    %v903 = vtanh.pop %v902
    %v904 = vmul.f32 %v895, %v903
    %s905 = scalar_lea.vmem [#allocation7], 256
    %v906 = vld [vmem:[%s905] sm:$0xff]
    %v907 = vld [vmem:[%s905 + $0x8] sm:$0xff]
    %v908 = vld [vmem:[%s905 + $0x10] sm:$0xff]
    %v909 = vld [vmem:[%s905 + $0x18] sm:$0xff]
    %v910 = vld [vmem:[%s905 + $0x20] sm:$0xff]
    %v911 = vld [vmem:[%s905 + $0x28] sm:$0xff]
    %v912 = vld [vmem:[%s905 + $0x30] sm:$0xff]
    %v913 = vld [vmem:[%s905 + $0x38] sm:$0xff]
    %915 = vrot.lane.b32.xlu0 %v904, 64
    %v916 = vpop.permute.xlu0 %915
    %v917 = vsel %vm77, %v916, 0
    %919 = vmatprep.subr.mxu0 0.0
    %920 = vmatpush1.msra.mxu0 %v906
    %921 = vmatprep.subr.mxu0 0.0
    %922 = vmatpush1.msra.mxu0 %v907
    %923 = vmatprep.subr.mxu0 0.0
    %924 = vmatpush1.msra.mxu0 %v908
    %925 = vmatprep.subr.mxu0 0.0
    %926 = vmatpush1.msra.mxu0 %v909
    %927 = vmatprep.subr.mxu0 0.0
    %928 = vmatpush1.msra.mxu0 %v910
    %929 = vmatprep.subr.mxu0 0.0
    %930 = vmatpush1.msra.mxu0 %v911
    %931 = vmatprep.subr.mxu0 0.0
    %932 = vmatpush1.msra.mxu0 %v912
    %933 = vmatprep.subr.mxu0 0.0
    %934 = vmatpush1.msra.mxu0 %v913
    %935 = vmatprep.subr.mxu0 0.0
    %936 = vmatpush1.msra.mxu0 0.0
    %937 = vmatprep.subr.mxu0 0.0
    %938 = vmatpush1.msra.mxu0 0.0
    %939 = vmatprep.subr.mxu0 0.0
    %940 = vmatpush1.msra.mxu0 0.0
    %941 = vmatprep.subr.mxu0 0.0
    %942 = vmatpush1.msra.mxu0 0.0
    %943 = vmatprep.subr.mxu0 0.0
    %944 = vmatpush1.msra.mxu0 0.0
    %945 = vmatprep.subr.mxu0 0.0
    %946 = vmatpush1.msra.mxu0 0.0
    %947 = vmatprep.subr.mxu0 0.0
    %948 = vmatpush1.msra.mxu0 0.0
    %949 = vmatprep.subr.mxu0 0.0
    %950 = vmatpush1.msra.mxu0 0.0
    %951 = vmatprep.subr.mxu0 0.0
    %952 = vmatpush1.msra.mxu0 0.0
    %953 = vmatprep.subr.mxu0 0.0
    %954 = vmatpush1.msra.mxu0 0.0
    %955 = vmatprep.subr.mxu0 0.0
    %956 = vmatpush1.msra.mxu0 0.0
    %957 = vmatprep.subr.mxu0 0.0
    %958 = vmatpush1.msra.mxu0 0.0
    %959 = vmatprep.subr.mxu0 0.0
    %960 = vmatpush1.msra.mxu0 0.0
    %961 = vmatprep.subr.mxu0 0.0
    %962 = vmatpush1.msra.mxu0 0.0
    %963 = vmatprep.subr.mxu0 0.0
    %964 = vmatpush1.msra.mxu0 0.0
    %965 = vmatprep.subr.mxu0 0.0
    %966 = vmatpush1.msra.mxu0 0.0
    %967 = vmatprep.subr.mxu0 0.0
    %968 = vmatpush1.msra.mxu0 0.0
    %969 = vmatprep.subr.mxu0 0.0
    %970 = vmatpush1.msra.mxu0 0.0
    %971 = vmatprep.subr.mxu0 0.0
    %972 = vmatpush1.msra.mxu0 0.0
    %973 = vmatprep.subr.mxu0 0.0
    %974 = vmatpush1.msra.mxu0 0.0
    %975 = vmatprep.subr.mxu0 0.0
    %976 = vmatpush1.msra.mxu0 0.0
    %977 = vmatprep.subr.mxu0 0.0
    %978 = vmatpush1.msra.mxu0 0.0
    %979 = vmatprep.subr.mxu0 0.0
    %980 = vmatpush1.msra.mxu0 0.0
    %981 = vmatprep.subr.mxu0 0.0
    %982 = vmatpush1.msra.mxu0 0.0
    %983 = vmatprep.mubr.f32.mxu0 0.0
    %984 = vmatmul.mubr.f32.gmra.mrb[0].mxu0 %v917
    %v985 = vpop.f32.mrb[0].mxu0
    %v986 = vadd.f32 0.0, %v985
    %v987 = vpop.f32.mrb[0].mxu0
    %988 = vdwg.mxu0
    %v989 = vadd.f32 %v806, %v986
    %s990 = scalar_lea.vmem [#allocation2], 80
    %v991 = vld [vmem:[%s990] sm:$0xff]
    %v992 = vld [vmem:[%s990 + $0x8] sm:$0xff]
    %993 = vmatprep.subr.mxu0 %v60
    %994 = vmatpush1.msra.mxu0 %v59
    %995 = vmatprep.subr.mxu0 %v62
    %996 = vmatpush1.msra.mxu0 %v61
    %997 = vmatprep.subr.mxu0 %v64
    %998 = vmatpush1.msra.mxu0 %v63
    %999 = vmatprep.subr.mxu0 %v66
    %1000 = vmatpush1.msra.mxu0 %v65
    %1001 = vmatprep.subr.mxu0 %v68
    %1002 = vmatpush1.msra.mxu0 %v67
    %1003 = vmatprep.subr.mxu0 %v70
    %1004 = vmatpush1.msra.mxu0 %v69
    %1005 = vmatprep.subr.mxu0 %v72
    %1006 = vmatpush1.msra.mxu0 %v71
    %1007 = vmatprep.subr.mxu0 %v74
    %1008 = vmatpush1.msra.mxu0 %v73
    %1009 = vmatprep.subr.mxu0 0.0
    %1010 = vmatpush1.msra.mxu0 0.0
    %1011 = vmatprep.subr.mxu0 0.0
    %1012 = vmatpush1.msra.mxu0 0.0
    %1013 = vmatprep.subr.mxu0 0.0
    %1014 = vmatpush1.msra.mxu0 0.0
    %1015 = vmatprep.subr.mxu0 0.0
    %1016 = vmatpush1.msra.mxu0 0.0
    %1017 = vmatprep.subr.mxu0 0.0
    %1018 = vmatpush1.msra.mxu0 0.0
    %1019 = vmatprep.subr.mxu0 0.0
    %1020 = vmatpush1.msra.mxu0 0.0
    %1021 = vmatprep.subr.mxu0 0.0
    %1022 = vmatpush1.msra.mxu0 0.0
    %1023 = vmatprep.subr.mxu0 0.0
    %1024 = vmatpush1.msra.mxu0 0.0
    %1025 = vmatprep.subr.mxu0 0.0
    %1026 = vmatpush1.msra.mxu0 0.0
    %1027 = vmatprep.subr.mxu0 0.0
    %1028 = vmatpush1.msra.mxu0 0.0
    %1029 = vmatprep.subr.mxu0 0.0
    %1030 = vmatpush1.msra.mxu0 0.0
    %1031 = vmatprep.subr.mxu0 0.0
    %1032 = vmatpush1.msra.mxu0 0.0
    %1033 = vmatprep.subr.mxu0 0.0
    %1034 = vmatpush1.msra.mxu0 0.0
    %1035 = vmatprep.subr.mxu0 0.0
    %1036 = vmatpush1.msra.mxu0 0.0
    %1037 = vmatprep.subr.mxu0 0.0
    %1038 = vmatpush1.msra.mxu0 0.0
    %1039 = vmatprep.subr.mxu0 0.0
    %1040 = vmatpush1.msra.mxu0 0.0
    %1041 = vmatprep.subr.mxu0 0.0
    %1042 = vmatpush1.msra.mxu0 0.0
    %1043 = vmatprep.subr.mxu0 0.0
    %1044 = vmatpush1.msra.mxu0 0.0
    %1045 = vmatprep.subr.mxu0 0.0
    %1046 = vmatpush1.msra.mxu0 0.0
    %1047 = vmatprep.subr.mxu0 0.0
    %1048 = vmatpush1.msra.mxu0 0.0
    %1049 = vmatprep.subr.mxu0 0.0
    %1050 = vmatpush1.msra.mxu0 0.0
    %1051 = vmatprep.subr.mxu0 0.0
    %1052 = vmatpush1.msra.mxu0 0.0
    %1053 = vmatprep.subr.mxu0 0.0
    %1054 = vmatpush1.msra.mxu0 0.0
    %1055 = vmatprep.subr.mxu0 0.0
    %1056 = vmatpush1.msra.mxu0 0.0
    %1057 = vmatprep.mubr.f32.mxu0 0.0
    %1058 = vmatmul.mubr.f32.gmra.mrb[0].mxu0 %v917
    %v1059 = vpop.f32.mrb[0].mxu0
    %v1060 = vadd.f32 0.0, %v1059
    %v1061 = vpop.f32.mrb[0].mxu0
    %v1062 = vadd.f32 0.0, %v1061
    %1063 = vdwg.mxu0
    %v1064 = vadd.f32 %v991, %v1060
    %v1065 = vadd.f32 %v992, %v1062
    %v1066 = vxor.u32 %v1064, 2147483648
    %v1067 = vmul.f32 %v1066, 1.442695
    %v1068 = vpow.pop %v1067
    %v1069 = vadd.f32 %v1068, 1.0
    %v1070 = vrcp.pop %v1069
    %v1071 = vmul.f32 1.0, %v1070
    %v1072 = vtanh.pop %v1065
    %v1073 = vxor.u32 %v1065, 2147483648
    %v1074 = vmul.f32 %v1073, 1.442695
    %v1075 = vpow.pop %v1074
    %v1076 = vadd.f32 %v1075, 1.0
    %v1077 = vrcp.pop %v1076
    %v1078 = vmul.f32 1.0, %v1077
    %v1079 = vmul.f32 %v1071, %v902
    %v1080 = vmul.f32 %v1071, %v1072
    %1082 = vrot.lane.b32.xlu0 %v1080, 64
    %v1083 = vpop.permute.xlu0 %1082
    %v1085 = vadd.f32 %v1079, %v1083
    %v1086 = vtanh.pop %v1085
    %v1087 = vmul.f32 %v1078, %v1086
    %s1088 = scalar_lea.vmem [#allocation7], 320
    %v1089 = vld [vmem:[%s1088] sm:$0xff]
    %v1090 = vld [vmem:[%s1088 + $0x8] sm:$0xff]
    %v1091 = vld [vmem:[%s1088 + $0x10] sm:$0xff]
    %v1092 = vld [vmem:[%s1088 + $0x18] sm:$0xff]
    %v1093 = vld [vmem:[%s1088 + $0x20] sm:$0xff]
    %v1094 = vld [vmem:[%s1088 + $0x28] sm:$0xff]
    %v1095 = vld [vmem:[%s1088 + $0x30] sm:$0xff]
    %v1096 = vld [vmem:[%s1088 + $0x38] sm:$0xff]
    %1098 = vrot.lane.b32.xlu0 %v1087, 64
    %v1099 = vpop.permute.xlu0 %1098
    %v1100 = vsel %vm77, %v1099, 0
    %1102 = vmatprep.subr.mxu0 0.0
    %1103 = vmatpush1.msra.mxu0 %v1089
    %1104 = vmatprep.subr.mxu0 0.0
    %1105 = vmatpush1.msra.mxu0 %v1090
    %1106 = vmatprep.subr.mxu0 0.0
    %1107 = vmatpush1.msra.mxu0 %v1091
    %1108 = vmatprep.subr.mxu0 0.0
    %1109 = vmatpush1.msra.mxu0 %v1092
    %1110 = vmatprep.subr.mxu0 0.0
    %1111 = vmatpush1.msra.mxu0 %v1093
    %1112 = vmatprep.subr.mxu0 0.0
    %1113 = vmatpush1.msra.mxu0 %v1094
    %1114 = vmatprep.subr.mxu0 0.0
    %1115 = vmatpush1.msra.mxu0 %v1095
    %1116 = vmatprep.subr.mxu0 0.0
    %1117 = vmatpush1.msra.mxu0 %v1096
    %1118 = vmatprep.subr.mxu0 0.0
    %1119 = vmatpush1.msra.mxu0 0.0
    %1120 = vmatprep.subr.mxu0 0.0
    %1121 = vmatpush1.msra.mxu0 0.0
    %1122 = vmatprep.subr.mxu0 0.0
    %1123 = vmatpush1.msra.mxu0 0.0
    %1124 = vmatprep.subr.mxu0 0.0
    %1125 = vmatpush1.msra.mxu0 0.0
    %1126 = vmatprep.subr.mxu0 0.0
    %1127 = vmatpush1.msra.mxu0 0.0
    %1128 = vmatprep.subr.mxu0 0.0
    %1129 = vmatpush1.msra.mxu0 0.0
    %1130 = vmatprep.subr.mxu0 0.0
    %1131 = vmatpush1.msra.mxu0 0.0
    %1132 = vmatprep.subr.mxu0 0.0
    %1133 = vmatpush1.msra.mxu0 0.0
    %1134 = vmatprep.subr.mxu0 0.0
    %1135 = vmatpush1.msra.mxu0 0.0
    %1136 = vmatprep.subr.mxu0 0.0
    %1137 = vmatpush1.msra.mxu0 0.0
    %1138 = vmatprep.subr.mxu0 0.0
    %1139 = vmatpush1.msra.mxu0 0.0
    %1140 = vmatprep.subr.mxu0 0.0
    %1141 = vmatpush1.msra.mxu0 0.0
    %1142 = vmatprep.subr.mxu0 0.0
    %1143 = vmatpush1.msra.mxu0 0.0
    %1144 = vmatprep.subr.mxu0 0.0
    %1145 = vmatpush1.msra.mxu0 0.0
    %1146 = vmatprep.subr.mxu0 0.0
    %1147 = vmatpush1.msra.mxu0 0.0
    %1148 = vmatprep.subr.mxu0 0.0
    %1149 = vmatpush1.msra.mxu0 0.0
    %1150 = vmatprep.subr.mxu0 0.0
    %1151 = vmatpush1.msra.mxu0 0.0
    %1152 = vmatprep.subr.mxu0 0.0
    %1153 = vmatpush1.msra.mxu0 0.0
    %1154 = vmatprep.subr.mxu0 0.0
    %1155 = vmatpush1.msra.mxu0 0.0
    %1156 = vmatprep.subr.mxu0 0.0
    %1157 = vmatpush1.msra.mxu0 0.0
    %1158 = vmatprep.subr.mxu0 0.0
    %1159 = vmatpush1.msra.mxu0 0.0
    %1160 = vmatprep.subr.mxu0 0.0
    %1161 = vmatpush1.msra.mxu0 0.0
    %1162 = vmatprep.subr.mxu0 0.0
    %1163 = vmatpush1.msra.mxu0 0.0
    %1164 = vmatprep.subr.mxu0 0.0
    %1165 = vmatpush1.msra.mxu0 0.0
    %1166 = vmatprep.mubr.f32.mxu0 0.0
    %1167 = vmatmul.mubr.f32.gmra.mrb[0].mxu0 %v1100
    %v1168 = vpop.f32.mrb[0].mxu0
    %v1169 = vadd.f32 0.0, %v1168
    %v1170 = vpop.f32.mrb[0].mxu0
    %1171 = vdwg.mxu0
    %v1172 = vadd.f32 %v989, %v1169
    %s1173 = scalar_lea.vmem [#allocation2], 96
    %v1174 = vld [vmem:[%s1173] sm:$0xff]
    %v1175 = vld [vmem:[%s1173 + $0x8] sm:$0xff]
    %1176 = vmatprep.subr.mxu0 %v60
    %1177 = vmatpush1.msra.mxu0 %v59
    %1178 = vmatprep.subr.mxu0 %v62
    %1179 = vmatpush1.msra.mxu0 %v61
    %1180 = vmatprep.subr.mxu0 %v64
    %1181 = vmatpush1.msra.mxu0 %v63
    %1182 = vmatprep.subr.mxu0 %v66
    %1183 = vmatpush1.msra.mxu0 %v65
    %1184 = vmatprep.subr.mxu0 %v68
    %1185 = vmatpush1.msra.mxu0 %v67
    %1186 = vmatprep.subr.mxu0 %v70
    %1187 = vmatpush1.msra.mxu0 %v69
    %1188 = vmatprep.subr.mxu0 %v72
    %1189 = vmatpush1.msra.mxu0 %v71
    %1190 = vmatprep.subr.mxu0 %v74
    %1191 = vmatpush1.msra.mxu0 %v73
    %1192 = vmatprep.subr.mxu0 0.0
    %1193 = vmatpush1.msra.mxu0 0.0
    %1194 = vmatprep.subr.mxu0 0.0
    %1195 = vmatpush1.msra.mxu0 0.0
    %1196 = vmatprep.subr.mxu0 0.0
    %1197 = vmatpush1.msra.mxu0 0.0
    %1198 = vmatprep.subr.mxu0 0.0
    %1199 = vmatpush1.msra.mxu0 0.0
    %1200 = vmatprep.subr.mxu0 0.0
    %1201 = vmatpush1.msra.mxu0 0.0
    %1202 = vmatprep.subr.mxu0 0.0
    %1203 = vmatpush1.msra.mxu0 0.0
    %1204 = vmatprep.subr.mxu0 0.0
    %1205 = vmatpush1.msra.mxu0 0.0
    %1206 = vmatprep.subr.mxu0 0.0
    %1207 = vmatpush1.msra.mxu0 0.0
    %1208 = vmatprep.subr.mxu0 0.0
    %1209 = vmatpush1.msra.mxu0 0.0
    %1210 = vmatprep.subr.mxu0 0.0
    %1211 = vmatpush1.msra.mxu0 0.0
    %1212 = vmatprep.subr.mxu0 0.0
    %1213 = vmatpush1.msra.mxu0 0.0
    %1214 = vmatprep.subr.mxu0 0.0
    %1215 = vmatpush1.msra.mxu0 0.0
    %1216 = vmatprep.subr.mxu0 0.0
    %1217 = vmatpush1.msra.mxu0 0.0
    %1218 = vmatprep.subr.mxu0 0.0
    %1219 = vmatpush1.msra.mxu0 0.0
    %1220 = vmatprep.subr.mxu0 0.0
    %1221 = vmatpush1.msra.mxu0 0.0
    %1222 = vmatprep.subr.mxu0 0.0
    %1223 = vmatpush1.msra.mxu0 0.0
    %1224 = vmatprep.subr.mxu0 0.0
    %1225 = vmatpush1.msra.mxu0 0.0
    %1226 = vmatprep.subr.mxu0 0.0
    %1227 = vmatpush1.msra.mxu0 0.0
    %1228 = vmatprep.subr.mxu0 0.0
    %1229 = vmatpush1.msra.mxu0 0.0
    %1230 = vmatprep.subr.mxu0 0.0
    %1231 = vmatpush1.msra.mxu0 0.0
    %1232 = vmatprep.subr.mxu0 0.0
    %1233 = vmatpush1.msra.mxu0 0.0
    %1234 = vmatprep.subr.mxu0 0.0
    %1235 = vmatpush1.msra.mxu0 0.0
    %1236 = vmatprep.subr.mxu0 0.0
    %1237 = vmatpush1.msra.mxu0 0.0
    %1238 = vmatprep.subr.mxu0 0.0
    %1239 = vmatpush1.msra.mxu0 0.0
    %1240 = vmatprep.mubr.f32.mxu0 0.0
    %1241 = vmatmul.mubr.f32.gmra.mrb[0].mxu0 %v1100
    %v1242 = vpop.f32.mrb[0].mxu0
    %v1243 = vadd.f32 0.0, %v1242
    %v1244 = vpop.f32.mrb[0].mxu0
    %v1245 = vadd.f32 0.0, %v1244
    %1246 = vdwg.mxu0
    %v1247 = vadd.f32 %v1174, %v1243
    %v1248 = vadd.f32 %v1175, %v1245
    %v1249 = vxor.u32 %v1247, 2147483648
    %v1250 = vmul.f32 %v1249, 1.442695
    %v1251 = vpow.pop %v1250
    %v1252 = vadd.f32 %v1251, 1.0
    %v1253 = vrcp.pop %v1252
    %v1254 = vmul.f32 1.0, %v1253
    %v1255 = vtanh.pop %v1248
    %v1256 = vxor.u32 %v1248, 2147483648
    %v1257 = vmul.f32 %v1256, 1.442695
    %v1258 = vpow.pop %v1257
    %v1259 = vadd.f32 %v1258, 1.0
    %v1260 = vrcp.pop %v1259
    %v1261 = vmul.f32 1.0, %v1260
    %v1262 = vmul.f32 %v1254, %v1085
    %v1263 = vmul.f32 %v1254, %v1255
    %1265 = vrot.lane.b32.xlu0 %v1263, 64
    %v1266 = vpop.permute.xlu0 %1265
    %v1268 = vadd.f32 %v1262, %v1266
    %v1269 = vtanh.pop %v1268
    %v1270 = vmul.f32 %v1261, %v1269
    %s1271 = scalar_lea.vmem [#allocation7], 384
    %v1272 = vld [vmem:[%s1271] sm:$0xff]
    %v1273 = vld [vmem:[%s1271 + $0x8] sm:$0xff]
    %v1274 = vld [vmem:[%s1271 + $0x10] sm:$0xff]
    %v1275 = vld [vmem:[%s1271 + $0x18] sm:$0xff]
    %v1276 = vld [vmem:[%s1271 + $0x20] sm:$0xff]
    %v1277 = vld [vmem:[%s1271 + $0x28] sm:$0xff]
    %v1278 = vld [vmem:[%s1271 + $0x30] sm:$0xff]
    %v1279 = vld [vmem:[%s1271 + $0x38] sm:$0xff]
    %1281 = vrot.lane.b32.xlu0 %v1270, 64
    %v1282 = vpop.permute.xlu0 %1281
    %v1283 = vsel %vm77, %v1282, 0
    %1285 = vmatprep.subr.mxu0 0.0
    %1286 = vmatpush1.msra.mxu0 %v1272
    %1287 = vmatprep.subr.mxu0 0.0
    %1288 = vmatpush1.msra.mxu0 %v1273
    %1289 = vmatprep.subr.mxu0 0.0
    %1290 = vmatpush1.msra.mxu0 %v1274
    %1291 = vmatprep.subr.mxu0 0.0
    %1292 = vmatpush1.msra.mxu0 %v1275
    %1293 = vmatprep.subr.mxu0 0.0
    %1294 = vmatpush1.msra.mxu0 %v1276
    %1295 = vmatprep.subr.mxu0 0.0
    %1296 = vmatpush1.msra.mxu0 %v1277
    %1297 = vmatprep.subr.mxu0 0.0
    %1298 = vmatpush1.msra.mxu0 %v1278
    %1299 = vmatprep.subr.mxu0 0.0
    %1300 = vmatpush1.msra.mxu0 %v1279
    %1301 = vmatprep.subr.mxu0 0.0
    %1302 = vmatpush1.msra.mxu0 0.0
    %1303 = vmatprep.subr.mxu0 0.0
    %1304 = vmatpush1.msra.mxu0 0.0
    %1305 = vmatprep.subr.mxu0 0.0
    %1306 = vmatpush1.msra.mxu0 0.0
    %1307 = vmatprep.subr.mxu0 0.0
    %1308 = vmatpush1.msra.mxu0 0.0
    %1309 = vmatprep.subr.mxu0 0.0
    %1310 = vmatpush1.msra.mxu0 0.0
    %1311 = vmatprep.subr.mxu0 0.0
    %1312 = vmatpush1.msra.mxu0 0.0
    %1313 = vmatprep.subr.mxu0 0.0
    %1314 = vmatpush1.msra.mxu0 0.0
    %1315 = vmatprep.subr.mxu0 0.0
    %1316 = vmatpush1.msra.mxu0 0.0
    %1317 = vmatprep.subr.mxu0 0.0
    %1318 = vmatpush1.msra.mxu0 0.0
    %1319 = vmatprep.subr.mxu0 0.0
    %1320 = vmatpush1.msra.mxu0 0.0
    %1321 = vmatprep.subr.mxu0 0.0
    %1322 = vmatpush1.msra.mxu0 0.0
    %1323 = vmatprep.subr.mxu0 0.0
    %1324 = vmatpush1.msra.mxu0 0.0
    %1325 = vmatprep.subr.mxu0 0.0
    %1326 = vmatpush1.msra.mxu0 0.0
    %1327 = vmatprep.subr.mxu0 0.0
    %1328 = vmatpush1.msra.mxu0 0.0
    %1329 = vmatprep.subr.mxu0 0.0
    %1330 = vmatpush1.msra.mxu0 0.0
    %1331 = vmatprep.subr.mxu0 0.0
    %1332 = vmatpush1.msra.mxu0 0.0
    %1333 = vmatprep.subr.mxu0 0.0
    %1334 = vmatpush1.msra.mxu0 0.0
    %1335 = vmatprep.subr.mxu0 0.0
    %1336 = vmatpush1.msra.mxu0 0.0
    %1337 = vmatprep.subr.mxu0 0.0
    %1338 = vmatpush1.msra.mxu0 0.0
    %1339 = vmatprep.subr.mxu0 0.0
    %1340 = vmatpush1.msra.mxu0 0.0
    %1341 = vmatprep.subr.mxu0 0.0
    %1342 = vmatpush1.msra.mxu0 0.0
    %1343 = vmatprep.subr.mxu0 0.0
    %1344 = vmatpush1.msra.mxu0 0.0
    %1345 = vmatprep.subr.mxu0 0.0
    %1346 = vmatpush1.msra.mxu0 0.0
    %1347 = vmatprep.subr.mxu0 0.0
    %1348 = vmatpush1.msra.mxu0 0.0
    %1349 = vmatprep.mubr.f32.mxu0 0.0
    %1350 = vmatmul.mubr.f32.gmra.mrb[0].mxu0 %v1283
    %v1351 = vpop.f32.mrb[0].mxu0
    %v1352 = vadd.f32 0.0, %v1351
    %v1353 = vpop.f32.mrb[0].mxu0
    %1354 = vdwg.mxu0
    %v1355 = vadd.f32 %v1172, %v1352
    %s1356 = scalar_lea.vmem [#allocation2], 112
    %v1357 = vld [vmem:[%s1356] sm:$0xff]
    %v1358 = vld [vmem:[%s1356 + $0x8] sm:$0xff]
    %1359 = vmatprep.subr.mxu0 %v60
    %1360 = vmatpush1.msra.mxu0 %v59
    %1361 = vmatprep.subr.mxu0 %v62
    %1362 = vmatpush1.msra.mxu0 %v61
    %1363 = vmatprep.subr.mxu0 %v64
    %1364 = vmatpush1.msra.mxu0 %v63
    %1365 = vmatprep.subr.mxu0 %v66
    %1366 = vmatpush1.msra.mxu0 %v65
    %1367 = vmatprep.subr.mxu0 %v68
    %1368 = vmatpush1.msra.mxu0 %v67
    %1369 = vmatprep.subr.mxu0 %v70
    %1370 = vmatpush1.msra.mxu0 %v69
    %1371 = vmatprep.subr.mxu0 %v72
    %1372 = vmatpush1.msra.mxu0 %v71
    %1373 = vmatprep.subr.mxu0 %v74
    %1374 = vmatpush1.msra.mxu0 %v73
    %1375 = vmatprep.subr.mxu0 0.0
    %1376 = vmatpush1.msra.mxu0 0.0
    %1377 = vmatprep.subr.mxu0 0.0
    %1378 = vmatpush1.msra.mxu0 0.0
    %1379 = vmatprep.subr.mxu0 0.0
    %1380 = vmatpush1.msra.mxu0 0.0
    %1381 = vmatprep.subr.mxu0 0.0
    %1382 = vmatpush1.msra.mxu0 0.0
    %1383 = vmatprep.subr.mxu0 0.0
    %1384 = vmatpush1.msra.mxu0 0.0
    %1385 = vmatprep.subr.mxu0 0.0
    %1386 = vmatpush1.msra.mxu0 0.0
    %1387 = vmatprep.subr.mxu0 0.0
    %1388 = vmatpush1.msra.mxu0 0.0
    %1389 = vmatprep.subr.mxu0 0.0
    %1390 = vmatpush1.msra.mxu0 0.0
    %1391 = vmatprep.subr.mxu0 0.0
    %1392 = vmatpush1.msra.mxu0 0.0
    %1393 = vmatprep.subr.mxu0 0.0
    %1394 = vmatpush1.msra.mxu0 0.0
    %1395 = vmatprep.subr.mxu0 0.0
    %1396 = vmatpush1.msra.mxu0 0.0
    %1397 = vmatprep.subr.mxu0 0.0
    %1398 = vmatpush1.msra.mxu0 0.0
    %1399 = vmatprep.subr.mxu0 0.0
    %1400 = vmatpush1.msra.mxu0 0.0
    %1401 = vmatprep.subr.mxu0 0.0
    %1402 = vmatpush1.msra.mxu0 0.0
    %1403 = vmatprep.subr.mxu0 0.0
    %1404 = vmatpush1.msra.mxu0 0.0
    %1405 = vmatprep.subr.mxu0 0.0
    %1406 = vmatpush1.msra.mxu0 0.0
    %1407 = vmatprep.subr.mxu0 0.0
    %1408 = vmatpush1.msra.mxu0 0.0
    %1409 = vmatprep.subr.mxu0 0.0
    %1410 = vmatpush1.msra.mxu0 0.0
    %1411 = vmatprep.subr.mxu0 0.0
    %1412 = vmatpush1.msra.mxu0 0.0
    %1413 = vmatprep.subr.mxu0 0.0
    %1414 = vmatpush1.msra.mxu0 0.0
    %1415 = vmatprep.subr.mxu0 0.0
    %1416 = vmatpush1.msra.mxu0 0.0
    %1417 = vmatprep.subr.mxu0 0.0
    %1418 = vmatpush1.msra.mxu0 0.0
    %1419 = vmatprep.subr.mxu0 0.0
    %1420 = vmatpush1.msra.mxu0 0.0
    %1421 = vmatprep.subr.mxu0 0.0
    %1422 = vmatpush1.msra.mxu0 0.0
    %1423 = vmatprep.mubr.f32.mxu0 0.0
    %1424 = vmatmul.mubr.f32.gmra.mrb[0].mxu0 %v1283
    %v1425 = vpop.f32.mrb[0].mxu0
    %v1426 = vadd.f32 0.0, %v1425
    %v1427 = vpop.f32.mrb[0].mxu0
    %v1428 = vadd.f32 0.0, %v1427
    %1429 = vdwg.mxu0
    %v1430 = vadd.f32 %v1357, %v1426
    %v1431 = vadd.f32 %v1358, %v1428
    %v1432 = vxor.u32 %v1430, 2147483648
    %v1433 = vmul.f32 %v1432, 1.442695
    %v1434 = vpow.pop %v1433
    %v1435 = vadd.f32 %v1434, 1.0
    %v1436 = vrcp.pop %v1435
    %v1437 = vmul.f32 1.0, %v1436
    %v1438 = vtanh.pop %v1431
    %v1439 = vxor.u32 %v1431, 2147483648
    %v1440 = vmul.f32 %v1439, 1.442695
    %v1441 = vpow.pop %v1440
    %v1442 = vadd.f32 %v1441, 1.0
    %v1443 = vrcp.pop %v1442
    %v1444 = vmul.f32 1.0, %v1443
    %v1445 = vmul.f32 %v1437, %v1268
    %v1446 = vmul.f32 %v1437, %v1438
    %1448 = vrot.lane.b32.xlu0 %v1446, 64
    %v1449 = vpop.permute.xlu0 %1448
    %v1451 = vadd.f32 %v1445, %v1449
    %v1452 = vtanh.pop %v1451
    %v1453 = vmul.f32 %v1444, %v1452
    %s1454 = scalar_lea.vmem [#allocation7], 448
    %v1455 = vld [vmem:[%s1454] sm:$0xff]
    %v1456 = vld [vmem:[%s1454 + $0x8] sm:$0xff]
    %v1457 = vld [vmem:[%s1454 + $0x10] sm:$0xff]
    %v1458 = vld [vmem:[%s1454 + $0x18] sm:$0xff]
    %v1459 = vld [vmem:[%s1454 + $0x20] sm:$0xff]
    %v1460 = vld [vmem:[%s1454 + $0x28] sm:$0xff]
    %v1461 = vld [vmem:[%s1454 + $0x30] sm:$0xff]
    %v1462 = vld [vmem:[%s1454 + $0x38] sm:$0xff]
    %1464 = vrot.lane.b32.xlu0 %v1453, 64
    %v1465 = vpop.permute.xlu0 %1464
    %v1466 = vsel %vm77, %v1465, 0
    %1468 = vmatprep.subr.mxu0 0.0
    %1469 = vmatpush1.msra.mxu0 %v1455
    %1470 = vmatprep.subr.mxu0 0.0
    %1471 = vmatpush1.msra.mxu0 %v1456
    %1472 = vmatprep.subr.mxu0 0.0
    %1473 = vmatpush1.msra.mxu0 %v1457
    %1474 = vmatprep.subr.mxu0 0.0
    %1475 = vmatpush1.msra.mxu0 %v1458
    %1476 = vmatprep.subr.mxu0 0.0
    %1477 = vmatpush1.msra.mxu0 %v1459
    %1478 = vmatprep.subr.mxu0 0.0
    %1479 = vmatpush1.msra.mxu0 %v1460
    %1480 = vmatprep.subr.mxu0 0.0
    %1481 = vmatpush1.msra.mxu0 %v1461
    %1482 = vmatprep.subr.mxu0 0.0
    %1483 = vmatpush1.msra.mxu0 %v1462
    %1484 = vmatprep.subr.mxu0 0.0
    %1485 = vmatpush1.msra.mxu0 0.0
    %1486 = vmatprep.subr.mxu0 0.0
    %1487 = vmatpush1.msra.mxu0 0.0
    %1488 = vmatprep.subr.mxu0 0.0
    %1489 = vmatpush1.msra.mxu0 0.0
    %1490 = vmatprep.subr.mxu0 0.0
    %1491 = vmatpush1.msra.mxu0 0.0
    %1492 = vmatprep.subr.mxu0 0.0
    %1493 = vmatpush1.msra.mxu0 0.0
    %1494 = vmatprep.subr.mxu0 0.0
    %1495 = vmatpush1.msra.mxu0 0.0
    %1496 = vmatprep.subr.mxu0 0.0
    %1497 = vmatpush1.msra.mxu0 0.0
    %1498 = vmatprep.subr.mxu0 0.0
    %1499 = vmatpush1.msra.mxu0 0.0
    %1500 = vmatprep.subr.mxu0 0.0
    %1501 = vmatpush1.msra.mxu0 0.0
    %1502 = vmatprep.subr.mxu0 0.0
    %1503 = vmatpush1.msra.mxu0 0.0
    %1504 = vmatprep.subr.mxu0 0.0
    %1505 = vmatpush1.msra.mxu0 0.0
    %1506 = vmatprep.subr.mxu0 0.0
    %1507 = vmatpush1.msra.mxu0 0.0
    %1508 = vmatprep.subr.mxu0 0.0
    %1509 = vmatpush1.msra.mxu0 0.0
    %1510 = vmatprep.subr.mxu0 0.0
    %1511 = vmatpush1.msra.mxu0 0.0
    %1512 = vmatprep.subr.mxu0 0.0
    %1513 = vmatpush1.msra.mxu0 0.0
    %1514 = vmatprep.subr.mxu0 0.0
    %1515 = vmatpush1.msra.mxu0 0.0
    %1516 = vmatprep.subr.mxu0 0.0
    %1517 = vmatpush1.msra.mxu0 0.0
    %1518 = vmatprep.subr.mxu0 0.0
    %1519 = vmatpush1.msra.mxu0 0.0
    %1520 = vmatprep.subr.mxu0 0.0
    %1521 = vmatpush1.msra.mxu0 0.0
    %1522 = vmatprep.subr.mxu0 0.0
    %1523 = vmatpush1.msra.mxu0 0.0
    %1524 = vmatprep.subr.mxu0 0.0
    %1525 = vmatpush1.msra.mxu0 0.0
    %1526 = vmatprep.subr.mxu0 0.0
    %1527 = vmatpush1.msra.mxu0 0.0
    %1528 = vmatprep.subr.mxu0 0.0
    %1529 = vmatpush1.msra.mxu0 0.0
    %1530 = vmatprep.subr.mxu0 0.0
    %1531 = vmatpush1.msra.mxu0 0.0
    %1532 = vmatprep.mubr.f32.mxu0 0.0
    %1533 = vmatmul.mubr.f32.gmra.mrb[0].mxu0 %v1466
    %v1534 = vpop.f32.mrb[0].mxu0
    %v1535 = vadd.f32 0.0, %v1534
    %v1536 = vpop.f32.mrb[0].mxu0
    %1537 = vdwg.mxu0
    %v1538 = vadd.f32 %v1355, %v1535
    %v1539 = vld [vmem:[%s3] sm:$0x1]
    %v1541 = vlaneseq
    %v1542 = vshrl.u32 %v1541, 7
    %v1543 = vsub.s32 0, %v1542
    %v1544 = vrot.slane %v1539, %v1543
    %v1546 = vadd.f32 %v1538, %v1544
    %1547 = vst [vmem:[#allocation8] sm:$0xff] %v1546
    // Predicated region
    $region30: #{tpu_custom_call.1} parent=1 // pred_check
      _
    $region31: #{tpu_custom_call.1} parent=1 // pred_check_branch
      %1549 = sbr.rel (0) target = $region33
    $region32: #{tpu_custom_call.1} parent=1 // pred_region
      %s1551 = ssub.s32 128, 128
      %1552 = vsyncadd [#allocation4], %s1551
      %s1554 = sshll.u32 [#allocation8], 4
      %s1555 = int_to_ptr.vmem [resolvable:$true] %s1554
      %1557 = dma.vmem_to_hbm [thread:$0]  %s1555, 128, %s4, [#allocation4]
    $region33: #{tpu_custom_call.1} parent=1 // pred_fallthru
      _
    // Predicated region
    $region34: #{tpu_custom_call.1} parent=1 // pred_check
      _
    $region35: #{tpu_custom_call.1} parent=1 // pred_check_branch
      %1559 = sbr.rel (0) target = $region37
    $region36: #{tpu_custom_call.1} parent=1 // pred_region
      %1560 = dma.done [#allocation4], 128
    $region37: #{tpu_custom_call.1} parent=1 // pred_fallthru
      _
    %1561 = vsyncpa [#allocation3], 1
    %1562 = vsyncpa [#allocation6], 1
    %1563 = vsyncpa [#allocation4], 1

</llo_original>
